<compile_context>
chip_gen: v7x
topology: tpu7x:2x2x1
jax: 0.10.0
libtpu: 0.0.40
codegen_flags: <defaults>
</compile_context>

<pallas_src>
import functools

import jax
import jax.numpy as jnp
from jax.experimental import pallas as pl
from jax.experimental.pallas import tpu as pltpu


# ----------------------------------------------------------------------------
# Tiling / compiler-param helpers
# ----------------------------------------------------------------------------
_VMEM_LIMIT_BYTES = 32 * 1024 * 1024   # >= default scoped limit everywhere, <= v7x physical (64 MiB)
_TM_CAP = 1024                         # rows/tile: 512-2048 hits 85%+ of HBM roofline
_ROW_BUDGET_BYTES = 6 * 1024 * 1024    # per-buffer-set budget (double buffering => ~2x this)


def _compiler_params():
    return pltpu.CompilerParams(
        dimension_semantics=("parallel",),     # M-tiles are independent -> 2 TCs on v7x
        vmem_limit_bytes=_VMEM_LIMIT_BYTES,
    )


def _choose_tm(M, bytes_per_row):
    tm = max(128, min(_TM_CAP, _ROW_BUDGET_BYTES // max(1, bytes_per_row)))
    if M <= tm:
        return M                       # single full block (exempt from the 8-row rule)
    return (tm // 128) * 128           # sublane/lane friendly tile


def _pad_rows(arrs, M, tm):
    pad = (-M) % tm
    if pad == 0:
        return arrs, M
    return [jnp.pad(a, ((0, pad), (0, 0))) for a in arrs], M + pad


# ----------------------------------------------------------------------------
# Pallas kernel 1: tiled matmul + bias with fused elementwise epilogue
#   (all convolutions / transposed-conv pieces, ResidualBlock activations)
# ----------------------------------------------------------------------------
def _conv_mm_kernel(*refs, epilogue):
    if epilogue == "add_relu":
        a_ref, w_ref, b_ref, s_ref, o_ref = refs
    else:
        a_ref, w_ref, b_ref, o_ref = refs
    acc = jnp.dot(a_ref[...], w_ref[...], preferred_element_type=jnp.float32) + b_ref[...]
    if epilogue == "relu":
        acc = jnp.maximum(acc, 0.0)
    elif epilogue == "add_relu":
        acc = jnp.maximum(acc + s_ref[...], 0.0)
    o_ref[...] = acc


def pallas_conv_mm(patches, w_mat, bias, *, epilogue="none", skip=None):
    """(M, K) @ (K, N) + bias with optional fused ReLU / skip-add-ReLU epilogue.

    MXU inputs are bf16 (f32 accumulation).  The grid is tiled over M so the
    HBM<->VMEM pipeline double-buffers and v7x's two TensorCores split rows.
    """
    assert epilogue in ("none", "relu", "add_relu")
    assert (skip is not None) == (epilogue == "add_relu")
    M, K = patches.shape
    N = w_mat.shape[1]

    a = patches.astype(jnp.bfloat16)
    w = w_mat.astype(jnp.bfloat16)
    b = jnp.asarray(bias, jnp.float32).reshape(1, N)

    bytes_per_row = K * 2 + N * 4 + (N * 4 if epilogue == "add_relu" else 0)
    tm = _choose_tm(M, bytes_per_row)
    row_arrs = [a] + ([skip.astype(jnp.float32)] if epilogue == "add_relu" else [])
    row_arrs, Mp = _pad_rows(row_arrs, M, tm)

    row_spec = lambda n: pl.BlockSpec((tm, n), lambda m: (m, 0))      # noqa: E731
    const_spec = lambda r, c: pl.BlockSpec((r, c), lambda m: (0, 0))  # noqa: E731

    operands = [row_arrs[0], w, b]
    in_specs = [row_spec(K), const_spec(K, N), const_spec(1, N)]
    if epilogue == "add_relu":
        operands.append(row_arrs[1])
        in_specs.append(row_spec(N))

    out = pl.pallas_call(
        functools.partial(_conv_mm_kernel, epilogue=epilogue),
        out_shape=jax.ShapeDtypeStruct((Mp, N), jnp.float32),
        grid=(Mp // tm,),
        in_specs=in_specs,
        out_specs=row_spec(N),
        compiler_params=_compiler_params(),
    )(*operands)
    return out[:M] if Mp != M else out


# ----------------------------------------------------------------------------
# Pallas kernel 2: fused ConvLSTM cell
#   optional conv_x matmul + conv_h (recurrent) matmul + gate math + 1x1 pred
#   head, all in one kernel epilogue.  Gate layout is [f | i | o | c] (matches
#   the PyTorch chunk(4, 1) order); slicing is done in-kernel (static lane
#   slices), not in the wrapper.
# ----------------------------------------------------------------------------
def _lstm_cell_kernel(*refs, C, has_xconv, has_h, with_pred):
    it = iter(refs)
    if has_xconv:
        xpat_ref, wxm_ref, bx_ref = next(it), next(it), next(it)
    else:
        wx4_ref = next(it)
    bh_ref = next(it)
    if has_h:
        hpat_ref, whm_ref, cprev_ref = next(it), next(it), next(it)
    if with_pred:
        predw_ref = next(it)
    c_ref, h_ref = next(it), next(it)
    if with_pred:
        pred_ref = next(it)

    # pre-activation gates: z = conv_x(x) + bx + conv_h(h_prev) + bh
    if has_xconv:
        z = (jnp.dot(xpat_ref[...], wxm_ref[...], preferred_element_type=jnp.float32)
             + bx_ref[...])
    else:
        z = wx4_ref[...]
    z = z + bh_ref[...]
    if has_h:
        z = z + jnp.dot(hpat_ref[...], whm_ref[...], preferred_element_type=jnp.float32)

    i = jax.nn.sigmoid(z[:, C:2 * C])
    o = jax.nn.sigmoid(z[:, 2 * C:3 * C])
    g = jnp.tanh(z[:, 3 * C:4 * C])
    next_c = i * g
    if has_h:                                   # t == 0 => prev_c == 0, skip f*c
        f = jax.nn.sigmoid(z[:, 0:C])
        next_c = next_c + f * cprev_ref[...]
    next_h = o * jnp.tanh(next_c)
    c_ref[...] = next_c
    h_ref[...] = next_h
    if with_pred:
        # fused 1x1 prediction head (final output -> keep f32, tiny matmul)
        pred_ref[...] = jnp.dot(next_h, predw_ref[...],
                                preferred_element_type=jnp.float32)


def pallas_lstm_cell(num_out_c, *, bh, wx4=None, x_patches=None, wx_mat=None, bx=None,
                     h_patches=None, wh_mat=None, cprev=None, pred_w=None):
    """Fused ConvLSTM cell step on an (M = B*H*W)-row layout.

    Pass either a precomputed conv_x output `wx4` (M, 4C), or fuse conv_x by
    passing `x_patches` (M, Kx) + `wx_mat` (Kx, 4C) + `bx`.
    `h_patches`/`wh_mat`/`cprev` may be omitted on the first timestep (zero
    state): the conv over prev_h is skipped entirely (only its bias survives).
    `pred_w` (C, 2) fuses the 1x1 prediction head into the epilogue.
    Returns (next_c, next_h[, pred]) as (M, C)[, (M, 2)] f32 arrays.
    """
    C = num_out_c
    C4 = 4 * C
    has_xconv = x_patches is not None
    has_h = h_patches is not None
    with_pred = pred_w is not None

    bh2 = jnp.asarray(bh, jnp.float32).reshape(1, C4)

    row_arrs, row_widths = [], []
    if has_xconv:
        M, Kx = x_patches.shape
        row_arrs.append(x_patches.astype(jnp.bfloat16)); row_widths.append(Kx)
        bytes_per_row = Kx * 2
    else:
        M = wx4.shape[0]
        row_arrs.append(wx4.astype(jnp.float32)); row_widths.append(C4)
        bytes_per_row = C4 * 4
    if has_h:
        Kh = h_patches.shape[1]
        row_arrs.append(h_patches.astype(jnp.bfloat16)); row_widths.append(Kh)
        row_arrs.append(cprev.astype(jnp.float32)); row_widths.append(C)
        bytes_per_row += Kh * 2 + C * 4
    bytes_per_row += 2 * C * 4 + (8 if with_pred else 0)    # outputs

    tm = _choose_tm(M, bytes_per_row)
    row_arrs, Mp = _pad_rows(row_arrs, M, tm)

    row_spec = lambda n: pl.BlockSpec((tm, n), lambda m: (m, 0))      # noqa: E731
    const_spec = lambda r, c: pl.BlockSpec((r, c), lambda m: (0, 0))  # noqa: E731

    operands, in_specs = [], []
    k = 0
    operands.append(row_arrs[k]); in_specs.append(row_spec(row_widths[k])); k += 1
    if has_xconv:
        operands.append(wx_mat.astype(jnp.bfloat16))
        in_specs.append(const_spec(wx_mat.shape[0], C4))
        operands.append(jnp.asarray(bx, jnp.float32).reshape(1, C4))
        in_specs.append(const_spec(1, C4))
    operands.append(bh2); in_specs.append(const_spec(1, C4))
    if has_h:
        operands.append(row_arrs[k]); in_specs.append(row_spec(row_widths[k])); k += 1
        operands.append(wh_mat.astype(jnp.bfloat16))
        in_specs.append(const_spec(wh_mat.shape[0], C4))
        operands.append(row_arrs[k]); in_specs.append(row_spec(row_widths[k])); k += 1
    if with_pred:
        operands.append(jnp.asarray(pred_w, jnp.float32))
        in_specs.append(const_spec(C, 2))

    out_shapes = [jax.ShapeDtypeStruct((Mp, C), jnp.float32),
                  jax.ShapeDtypeStruct((Mp, C), jnp.float32)]
    out_specs = [row_spec(C), row_spec(C)]
    if with_pred:
        out_shapes.append(jax.ShapeDtypeStruct((Mp, 2), jnp.float32))
        out_specs.append(row_spec(2))

    outs = pl.pallas_call(
        functools.partial(_lstm_cell_kernel, C=C, has_xconv=has_xconv,
                          has_h=has_h, with_pred=with_pred),
        out_shape=tuple(out_shapes),
        grid=(Mp // tm,),
        in_specs=in_specs,
        out_specs=tuple(out_specs),
        compiler_params=_compiler_params(),
    )(*operands)
    if Mp != M:
        outs = tuple(o[:M] for o in outs)
    return outs


# ----------------------------------------------------------------------------
# Conv glue (im2col / weight reshaping) — plain JAX feeding the Pallas kernels.
# TODO(synk): replace the HBM-materialised im2col with a direct-conv Pallas
#             kernel (halo'd input tile + kh*kw accumulated shifted matmuls)
#             to cut HBM read traffic by ~kh*kw on memory-bound layers.
# ----------------------------------------------------------------------------
def _im2col(x_nhwc, kh, kw, stride, pad):
    """NHWC -> (B*Ho*Wo, kh*kw*C) patch matrix; column order (ky, kx, c)."""
    x = jnp.pad(x_nhwc, ((0, 0), (pad, pad), (pad, pad), (0, 0)))
    B, Hp, Wp, C = x.shape
    Ho = (Hp - kh) // stride + 1
    Wo = (Wp - kw) // stride + 1
    cols = []
    for i in range(kh):
        for j in range(kw):
            cols.append(x[:, i:i + stride * Ho:stride, j:j + stride * Wo:stride, :])
    p = jnp.concatenate(cols, axis=-1)
    return p.reshape(B * Ho * Wo, kh * kw * C), (B, Ho, Wo)


def conv_weight_to_mat(w_oihw):
    """PyTorch Conv2d weight (O, I, kh, kw) -> (kh*kw*I, O) matmul matrix."""
    O, I, kh, kw = w_oihw.shape
    return jnp.transpose(w_oihw, (2, 3, 1, 0)).reshape(kh * kw * I, O)


def convT_weight_to_mat(w_iohw):
    """ConvTranspose2d(stride=1, pad=p) == Conv2d(flipped kernel, pad=k-1-p)."""
    w = jnp.transpose(jnp.flip(w_iohw, axis=(2, 3)), (1, 0, 2, 3))
    return conv_weight_to_mat(w)


def conv2d(x_nhwc, w_oihw, bias, stride, pad, *, epilogue="none", skip=None):
    """PyTorch-semantics Conv2d with a fused elementwise epilogue."""
    O = w_oihw.shape[0]
    kh, kw = w_oihw.shape[2], w_oihw.shape[3]
    patches, (B, Ho, Wo) = _im2col(x_nhwc, kh, kw, stride, pad)
    y = pallas_conv_mm(patches, conv_weight_to_mat(w_oihw), bias,
                       epilogue=epilogue, skip=skip)
    return y.reshape(B, Ho, Wo, O)


def conv_transpose2d_s2k4(x_nhwc, w_iohw, bias):
    """PyTorch ConvTranspose2d(kernel=4, stride=2, pad=1) via sub-pixel
    decomposition: one stride-1 2x2 conv per output-pixel parity, then
    interleave.  Avoids the 4x zero-inserted activations / 4x im2col blow-up
    of the dense zero-insertion lowering."""
    I, O, kh, kw = w_iohw.shape
    assert (kh, kw) == (4, 4)
    B, H, W, C = x_nhwc.shape
    xp = jnp.pad(x_nhwc, ((0, 0), (1, 1), (1, 1), (0, 0)))
    kmap = ((3, 1), (2, 0))            # parity -> kernel taps for offsets (0, 1)
    outs = []
    for py in (0, 1):
        for px in (0, 1):
            cols = []
            for dy in (0, 1):
                for dx in (0, 1):
                    cols.append(xp[:, py + dy:py + dy + H, px + dx:px + dx + W, :])
            patches = jnp.concatenate(cols, axis=-1).reshape(B * H * W, 4 * C)
            w_sub = jnp.stack(
                [jnp.stack([w_iohw[:, :, kmap[py][dy], kmap[px][dx]]
                            for dx in (0, 1)], axis=0)
                 for dy in (0, 1)], axis=0)                 # (2, 2, I, O)
            y = pallas_conv_mm(patches, w_sub.reshape(4 * I, O), bias)
            outs.append(y.reshape(B, H, W, O))
    y = jnp.stack(outs, axis=0).reshape(2, 2, B, H, W, O)
    y = jnp.transpose(y, (2, 3, 0, 4, 1, 5)).reshape(B, 2 * H, 2 * W, O)
    return y


# ----------------------------------------------------------------------------
# Blocks
# ----------------------------------------------------------------------------
def residual_block(p, x):
    B, H, W, C = x.shape
    y = conv2d(x, p['w1'], p['b1'], stride=1, pad=1, epilogue="relu")
    y = conv2d(y, p['w2'], p['b2'], stride=1, pad=1, epilogue="add_relu",
               skip=x.reshape(B * H * W, C))
    return y


# ----------------------------------------------------------------------------
# Model: parameter init + forward
# ----------------------------------------------------------------------------
MODEL_OPTIONS = dict(num_pols=4, num_encoders=2, num_res_blocks=1,
                     norm='none', c_mul=2, num_base_c=8)


def init_params(key, opt):
    ne = opt['num_encoders']
    nb = opt['num_base_c']
    cm = opt['c_mul']
    enc_in = [int(nb * cm ** i) for i in range(ne)]
    enc_out = [int(nb * cm ** (i + 1)) for i in range(ne)]

    def nrm(k, shape, scale):
        return jax.random.normal(k, shape, jnp.float32) * scale

    params = {'encoders': [], 'res_blocks': [], 'decoders': [], 'preds': []}
    keys = iter(jax.random.split(key, 64))

    # encoders (Conv2d): conv_x (4*out, in, 3, 3); conv_h (4*out, out, 3, 3)
    for i in range(ne):
        ic = opt['num_pols'] if i == 0 else enc_in[i]
        oc = enc_out[i]
        params['encoders'].append(dict(
            wx=nrm(next(keys), (4 * oc, ic, 3, 3), 0.1),
            bx=nrm(next(keys), (4 * oc,), 0.01),
            wh=nrm(next(keys), (4 * oc, oc, 3, 3), 0.1),
            bh=nrm(next(keys), (4 * oc,), 0.01),
        ))

    # residual blocks at the bottleneck (enc_out[-1] channels)
    for _ in range(opt['num_res_blocks']):
        c = enc_out[-1]
        params['res_blocks'].append(dict(
            w1=nrm(next(keys), (c, c, 3, 3), 0.05),
            b1=nrm(next(keys), (c,), 0.01),
            w2=nrm(next(keys), (c, c, 3, 3), 0.05),
            b2=nrm(next(keys), (c,), 0.01),
        ))

    # decoders (ConvTranspose2d): conv_x (in, 4*out, 4, 4); conv_h (out, 4*out, 3, 3)
    dec_in = list(reversed(enc_out))
    dec_out = list(reversed(enc_in))
    build_res = opt['num_res_blocks'] != 0
    for i in range(ne):
        skip = 0 if (not build_res and i == 0) else dec_in[i]
        xtra = 0 if i == 0 else 2
        ic = dec_in[i] + xtra + skip
        oc = dec_out[i]
        params['decoders'].append(dict(
            wx=nrm(next(keys), (ic, 4 * oc, 4, 4), 0.1),
            bx=nrm(next(keys), (4 * oc,), 0.01),
            wh=nrm(next(keys), (oc, 4 * oc, 3, 3), 0.1),
            bh=nrm(next(keys), (4 * oc,), 0.01),
        ))

    # prediction heads: 1x1 conv, no bias
    for oc in reversed(enc_in):
        params['preds'].append(dict(w=nrm(next(keys), (2, oc, 1, 1), 0.1)))

    return params


def forward(params, inps, opt):
    """inps: (B, T, num_pols, H, W) float32 (NCHW per timestep, like PyTorch)."""
    ne = opt['num_encoders']
    build_res = opt['num_res_blocks'] != 0
    T = inps.shape[1]

    prev_c = [None] * (2 * ne)
    prev_h = [None] * (2 * ne)
    all_preds = []

    for t in range(T):
        x = jnp.transpose(inps[:, t], (0, 2, 3, 1))   # NCHW -> NHWC
        blocks = []

        # ---- encoders: fully fused ConvLSTM cell (conv_x + conv_h + gates) ----
        for i in range(ne):
            p = params['encoders'][i]
            C = p['wh'].shape[1]
            x_patches, (Bo, Ho, Wo) = _im2col(x, 3, 3, stride=2, pad=1)
            cell_kw = dict(x_patches=x_patches, wx_mat=conv_weight_to_mat(p['wx']),
                           bx=p['bx'], bh=p['bh'])
            if prev_h[i] is not None:       # t > 0: include the recurrent conv
                h_patches, _ = _im2col(prev_h[i], 3, 3, stride=1, pad=1)
                cell_kw.update(h_patches=h_patches,
                               wh_mat=conv_weight_to_mat(p['wh']),
                               cprev=prev_c[i].reshape(-1, C))
            c2, h2 = pallas_lstm_cell(C, **cell_kw)
            c = c2.reshape(Bo, Ho, Wo, C)
            h = h2.reshape(Bo, Ho, Wo, C)
            prev_c[i], prev_h[i] = c, h
            x = h
            blocks.append(h)

        # ---- residual bottleneck (fused conv+ReLU / conv+add+ReLU) ----
        if build_res:
            for rp in params['res_blocks']:
                x = residual_block(rp, x)

        # ---- decoders: sub-pixel transposed conv_x; fused conv_h+gates+pred ----
        predictions = []
        off = ne
        for i in range(ne):
            if i == 0:
                if build_res:
                    x = jnp.concatenate([x, blocks[ne - 1]], axis=-1)
            else:
                x = jnp.concatenate([x, blocks[ne - i - 1], predictions[-1]], axis=-1)
            p = params['decoders'][i]
            C = p['wh'].shape[0]
            wx4 = conv_transpose2d_s2k4(x, p['wx'], p['bx'])     # (B, 2H, 2W, 4C)
            Bo, Ho, Wo, _ = wx4.shape
            pred_w = jnp.transpose(params['preds'][i]['w'], (2, 3, 1, 0)).reshape(C, 2)
            cell_kw = dict(wx4=wx4.reshape(Bo * Ho * Wo, 4 * C),
                           bh=p['bh'], pred_w=pred_w)
            if prev_h[off + i] is not None:
                h_patches, _ = _im2col(prev_h[off + i], 3, 3, stride=1, pad=1)
                cell_kw.update(h_patches=h_patches,
                               wh_mat=convT_weight_to_mat(p['wh']),
                               cprev=prev_c[off + i].reshape(-1, C))
            c2, h2, pr = pallas_lstm_cell(C, **cell_kw)
            c = c2.reshape(Bo, Ho, Wo, C)
            h = h2.reshape(Bo, Ho, Wo, C)
            prev_c[off + i], prev_h[off + i] = c, h
            x = h
            predictions.append(pr.reshape(Bo, Ho, Wo, 2))
        all_preds.append(predictions[-1])

    to_nchw = lambda a: jnp.transpose(a, (0, 3, 1, 2))   # noqa: E731
    return ([to_nchw(p) for p in all_preds]
            + [to_nchw(c) for c in prev_c]
            + [to_nchw(h) for h in prev_h])


# ----------------------------------------------------------------------------
if __name__ == "__main__":
    def _assert_close(got, ref, tol=5e-2):
        err = float(jnp.max(jnp.abs(got - ref)))
        bound = tol * (1.0 + float(jnp.max(jnp.abs(ref))))
        assert err <= bound, f"max abs err {err} > bound {bound}"

    key = jax.random.PRNGKey(0)
    k_param, k_inp, k_a, k_w, k_b = jax.random.split(key, 5)

    # --- unit check 1: tiled conv matmul (grid > 1, row padding, fused ReLU) ---
    Mv, Kv, Nv = 3000, 144, 64
    av = jax.random.normal(k_a, (Mv, Kv), jnp.float32)
    wv = jax.random.normal(k_w, (Kv, Nv), jnp.float32) * 0.1
    bv = jax.random.normal(k_b, (Nv,), jnp.float32) * 0.1
    got_mm = pallas_conv_mm(av, wv, bv, epilogue="relu")
    a16 = av.astype(jnp.bfloat16).astype(jnp.float32)
    w16 = wv.astype(jnp.bfloat16).astype(jnp.float32)
    ref_mm = jnp.maximum(a16 @ w16 + bv[None, :], 0.0)
    assert got_mm.shape == (Mv, Nv)
    _assert_close(got_mm, ref_mm)

    # --- unit check 2: fused LSTM cell (grid > 1, recurrent matmul, gates, pred) ---
    Cc, Kh, Ml = 16, 144, 2500
    ks = jax.random.split(k_a, 6)
    wx4v = jax.random.normal(ks[0], (Ml, 4 * Cc), jnp.float32)
    hpv = jax.random.normal(ks[1], (Ml, Kh), jnp.float32)
    whv = jax.random.normal(ks[2], (Kh, 4 * Cc), jnp.float32) * 0.05
    bhv = jax.random.normal(ks[3], (4 * Cc,), jnp.float32) * 0.1
    cpv = jax.random.normal(ks[4], (Ml, Cc), jnp.float32)
    pwv = jax.random.normal(ks[5], (Cc, 2), jnp.float32) * 0.1
    c_got, h_got, p_got = pallas_lstm_cell(Cc, wx4=wx4v, bh=bhv, h_patches=hpv,
                                           wh_mat=whv, cprev=cpv, pred_w=pwv)
    z = (wx4v + bhv[None, :]
         + hpv.astype(jnp.bfloat16).astype(jnp.float32)
         @ whv.astype(jnp.bfloat16).astype(jnp.float32))
    f_r = jax.nn.sigmoid(z[:, :Cc]); i_r = jax.nn.sigmoid(z[:, Cc:2 * Cc])
    o_r = jax.nn.sigmoid(z[:, 2 * Cc:3 * Cc]); g_r = jnp.tanh(z[:, 3 * Cc:])
    c_ref = i_r * g_r + f_r * cpv
    h_ref = o_r * jnp.tanh(c_ref)
    p_ref = h_ref @ pwv
    _assert_close(c_got, c_ref)
    _assert_close(h_got, h_ref)
    _assert_close(p_got, p_ref)

    # --- unit check 3: sub-pixel transposed conv vs dense reference ---
    kt = jax.random.split(k_b, 3)
    xv = jax.random.normal(kt[0], (2, 5, 7, 6), jnp.float32)
    wtv = jax.random.normal(kt[1], (6, 8, 4, 4), jnp.float32) * 0.1
    btv = jax.random.normal(kt[2], (8,), jnp.float32) * 0.1
    got_ct = conv_transpose2d_s2k4(xv, wtv, btv)
    ref_ct = jax.lax.conv_general_dilated(
        xv, jnp.transpose(jnp.flip(wtv, (2, 3)), (2, 3, 0, 1)),
        window_strides=(1, 1), padding=((2, 2), (2, 2)),
        lhs_dilation=(2, 2),
        dimension_numbers=('NHWC', 'HWIO', 'NHWC')) + btv[None, None, None, :]
    assert got_ct.shape == (2, 10, 14, 8)
    _assert_close(got_ct, ref_ct)

    # --- full model forward ---
    params = init_params(k_param, MODEL_OPTIONS)
    B, T, C, H, W = 2, 2, MODEL_OPTIONS['num_pols'], 16, 16
    inps = jax.random.normal(k_inp, (B, T, C, H, W), jnp.float32)

    fwd = jax.jit(functools.partial(forward, params, opt=MODEL_OPTIONS))
    outs = jax.block_until_ready(fwd(inps))

    ne = MODEL_OPTIONS['num_encoders']
    assert len(outs) == T + 4 * ne                 # T preds + 2*ne cells + 2*ne hiddens
    assert outs[0].shape == (B, 2, H, W)
    assert outs[T].shape[1] == MODEL_OPTIONS['num_base_c'] * MODEL_OPTIONS['c_mul']
    assert all(bool(jnp.all(jnp.isfinite(o))) for o in outs)

    print("KERNEL_OK")
</pallas_src>

<mosaic_0001>
module attributes {stable_mosaic.version = 11 : i64} {
  func.func @_conv_mm_kernel(%arg0: i32, %arg1: memref<1024x144xbf16, #tpu.memory_space<vmem>>, %arg2: memref<144x64xbf16, #tpu.memory_space<vmem>>, %arg3: memref<1x64xf32, #tpu.memory_space<vmem>>, %arg4: memref<1024x64xf32, #tpu.memory_space<vmem>>) attributes {dimension_semantics = [#tpu.dimension_semantics<parallel>], iteration_bounds = array<i64: 3>, scalar_prefetch = 0 : i64, scratch_operands = 0 : i64, tpu.core_type = #tpu.core_type<tc>, window_params = [{transform_indices = @transform_0, window_bounds = array<i64: 1024, 144>}, {pipeline_mode = #tpu.pipeline_mode<synchronous>, transform_indices = @transform_1, window_bounds = array<i64: 144, 64>}, {pipeline_mode = #tpu.pipeline_mode<synchronous>, transform_indices = @transform_2, window_bounds = array<i64: 1, 64>}, {transform_indices = @transform_3, window_bounds = array<i64: 1024, 64>}]} {
    %c0 = arith.constant 0 : index
    %c0_0 = arith.constant 0 : index
    %0 = vector.load %arg1[%c0, %c0_0] : memref<1024x144xbf16, #tpu.memory_space<vmem>>, vector<1024x144xbf16>
    %c0_1 = arith.constant 0 : index
    %c0_2 = arith.constant 0 : index
    %1 = vector.load %arg2[%c0_1, %c0_2] : memref<144x64xbf16, #tpu.memory_space<vmem>>, vector<144x64xbf16>
    %cst = arith.constant dense<0.000000e+00> : vector<1024x64xf32>
    %2 = tpu.matmul %0, %1, %cst {dimension_numbers = #tpu.dot_dimension_numbers<[1], [0], [0], [1], [0, 0, 1, 1], [], []>} : vector<1024x144xbf16>, vector<144x64xbf16>, vector<1024x64xf32> -> vector<1024x64xf32>
    %c0_3 = arith.constant 0 : index
    %c0_4 = arith.constant 0 : index
    %3 = vector.load %arg3[%c0_3, %c0_4] : memref<1x64xf32, #tpu.memory_space<vmem>>, vector<1x64xf32>
    %4 = vector.broadcast %3 : vector<1x64xf32> to vector<1024x64xf32>
    %5 = arith.addf %2, %4 : vector<1024x64xf32>
    %cst_5 = arith.constant 0.000000e+00 : f32
    %6 = vector.broadcast %cst_5 : f32 to vector<1024x64xf32>
    %7 = arith.maximumf %5, %6 : vector<1024x64xf32>
    %c0_6 = arith.constant 0 : index
    %c0_7 = arith.constant 0 : index
    %8 = vector.load %arg4[%c0_6, %c0_7] : memref<1024x64xf32, #tpu.memory_space<vmem>>, vector<1024x64xf32>
    tpu.vector_store %arg4[%c0_6, %c0_7], %7 {strides = array<i32>} : memref<1024x64xf32, #tpu.memory_space<vmem>>, vector<1024x64xf32>,
    return
  }
  func.func @transform_0(%arg0: i32) -> (i32, i32) {
    %c0_i32 = arith.constant 0 : i32
    %c0_i32_0 = arith.constant 0 : i32
    return %arg0, %c0_i32 : i32, i32
  }
  func.func @transform_1(%arg0: i32) -> (i32, i32) {
    %c0_i32 = arith.constant 0 : i32
    %c0_i32_0 = arith.constant 0 : i32
    %c0_i32_1 = arith.constant 0 : i32
    return %c0_i32, %c0_i32_0 : i32, i32
  }
  func.func @transform_2(%arg0: i32) -> (i32, i32) {
    %c0_i32 = arith.constant 0 : i32
    %c0_i32_0 = arith.constant 0 : i32
    %c0_i32_1 = arith.constant 0 : i32
    return %c0_i32, %c0_i32_0 : i32, i32
  }
  func.func @transform_3(%arg0: i32) -> (i32, i32) {
    %c0_i32 = arith.constant 0 : i32
    %c0_i32_0 = arith.constant 0 : i32
    return %arg0, %c0_i32 : i32, i32
  }
}

</mosaic_0001>

<llo_original>
// kernel: tpu_custom_call.1
$region0: #{tpu_custom_call.1}
  #allocation0 [shape = 'u32[]', space=smem, size = 0x4, offset = 0x4, fixed_abs, tag = 'smem constant byte address 0x4 - core index']
  #allocation1 [shape = 'u32[144,128]{1,0:T(1,128)}', space=vmem, size = 0x12000, scoped, tag = 'internal scratch']
  %s0 = inlined_call_operand.vmem [shape: bf16[3072,144], index: 0, kind: input, shape index: {}]
  %s1 = inlined_call_operand.vmem [shape: bf16[144,64], index: 1, kind: input, shape index: {}]
  %s2 = inlined_call_operand.vmem [shape: f32[1,64], index: 2, kind: input, shape index: {}]
  %s3 = inlined_call_operand.vmem [shape: f32[3072,64], index: 3, kind: output, shape index: {}]
  %s4 = sld [smem:[#allocation0]]
  $region45: #{tpu_custom_call.1} parent=0
    _
  %s6 = ssub.s32 1, %s4
  %s7 = scalar_select 0, %s6, %s4
  loop: start=0, step=1, limit=5
  $region2: #{tpu_custom_call.1} parent=0 // loop_pre_header
    _
  $region3: #{tpu_custom_call.1} parent=0 // loop_header
    %s9 = sphi 0, %s13
    %p10 = scmp.ge.s32.totalorder %s9, 5
    %s19 = sphi 0, %s21
    %s22 = sphi 0, %s19
    %s23 = sphi 0, %s22
    %s39 = sphi 0, %s23
    %s43 = sphi 0, %s43
    %s45 = sphi 0, %s43
    %s46 = sphi 0, %s45
    %s60 = sphi 0, %s46
    %s64 = sphi 0, %s64
    %s66 = sphi 0, %s64
    %s67 = sphi 0, %s66
    %s81 = sphi 0, %s67
    %s87 = sphi 0, %s89
    %s90 = sphi 0, %s87
    %s91 = sphi 0, %s90
    %s107 = sphi 0, %s91
  $region4: #{tpu_custom_call.1} parent=0 // loop_header_branch
    %12 = sbr.rel (%p10) target = $region8
  $region5: #{tpu_custom_call.1} parent=0 // loop_body
    %s14 = ssub.s32 %s9, 1
    %s15 = ssub.s32 %s9, 2
    %s16 = sadd.s32 %s9, 1
    %s17 = ssub.s32 %s9, %s16
    %p18 = scmp.eq.s32.totalorder %s17, 0
    %s20 = sadd.s32 %s19, 1
    %s21 = scalar_select %p18, %s19, %s20
    %p24 = pneg %p18
    %p25 = scmp.eq.s32.totalorder %s9, 2
    %p26 = por %p24, %p25
    %p27 = scmp.ne.s32.totalorder %s19, %s22
    %p28 = scmp.eq.s32.totalorder %s9, 0
    %p29 = por %p27, %p28
    %p30 = scmp.ne.s32.totalorder %s19, %s22
    %p31 = scmp.eq.s32.totalorder %s14, 2
    %p32 = por %p30, %p31
    %p33 = scmp.ne.s32.totalorder %s22, %s23
    %p34 = scmp.eq.s32.totalorder %s14, 0
    %p35 = por %p33, %p34
    %p36 = scmp.ne.s32.totalorder %s22, %s23
    %p37 = scmp.eq.s32.totalorder %s15, 2
    %p38 = por %p36, %p37
    %p40 = scmp.ne.s32.totalorder %s23, %s39
    %p41 = scmp.eq.s32.totalorder %s15, 0
    %p42 = por %p40, %p41
    %s44 = sadd.s32 %s43, 1
    %p47 = scmp.eq.s32.totalorder %s9, 2
    %p48 = scmp.ne.s32.totalorder %s43, %s45
    %p49 = scmp.eq.s32.totalorder %s9, 0
    %p50 = por %p48, %p49
    %p51 = scmp.ne.s32.totalorder %s43, %s45
    %p52 = scmp.eq.s32.totalorder %s14, 2
    %p53 = por %p51, %p52
    %p54 = scmp.ne.s32.totalorder %s45, %s46
    %p55 = scmp.eq.s32.totalorder %s14, 0
    %p56 = por %p54, %p55
    %p57 = scmp.ne.s32.totalorder %s45, %s46
    %p58 = scmp.eq.s32.totalorder %s15, 2
    %p59 = por %p57, %p58
    %p61 = scmp.ne.s32.totalorder %s46, %s60
    %p62 = scmp.eq.s32.totalorder %s15, 0
    %p63 = por %p61, %p62
    %s65 = sadd.s32 %s64, 1
    %p68 = scmp.eq.s32.totalorder %s9, 2
    %p69 = scmp.ne.s32.totalorder %s64, %s66
    %p70 = scmp.eq.s32.totalorder %s9, 0
    %p71 = por %p69, %p70
    %p72 = scmp.ne.s32.totalorder %s64, %s66
    %p73 = scmp.eq.s32.totalorder %s14, 2
    %p74 = por %p72, %p73
    %p75 = scmp.ne.s32.totalorder %s66, %s67
    %p76 = scmp.eq.s32.totalorder %s14, 0
    %p77 = por %p75, %p76
    %p78 = scmp.ne.s32.totalorder %s66, %s67
    %p79 = scmp.eq.s32.totalorder %s15, 2
    %p80 = por %p78, %p79
    %p82 = scmp.ne.s32.totalorder %s67, %s81
    %p83 = scmp.eq.s32.totalorder %s15, 0
    %p84 = por %p82, %p83
    %s85 = ssub.s32 %s9, %s16
    %p86 = scmp.eq.s32.totalorder %s85, 0
    %s88 = sadd.s32 %s87, 1
    %s89 = scalar_select %p86, %s87, %s88
    %p92 = pneg %p86
    %p93 = scmp.eq.s32.totalorder %s9, 2
    %p94 = por %p92, %p93
    %p95 = scmp.ne.s32.totalorder %s87, %s90
    %p96 = scmp.eq.s32.totalorder %s9, 0
    %p97 = por %p95, %p96
    %p98 = scmp.ne.s32.totalorder %s87, %s90
    %p99 = scmp.eq.s32.totalorder %s14, 2
    %p100 = por %p98, %p99
    %p101 = scmp.ne.s32.totalorder %s90, %s91
    %p102 = scmp.eq.s32.totalorder %s14, 0
    %p103 = por %p101, %p102
    %p104 = scmp.ne.s32.totalorder %s90, %s91
    %p105 = scmp.eq.s32.totalorder %s15, 2
    %p106 = por %p104, %p105
    %p108 = scmp.ne.s32.totalorder %s91, %s107
    %p109 = scmp.eq.s32.totalorder %s15, 0
    %p110 = por %p108, %p109
    %p111 = scmp.le.s32.totalorder 1, %s9
    %p112 = scmp.lt.s32.totalorder %s9, 4
    %p113 = pnand %p111, %p112
    %p114 = pneg %p113
    // Predicated region
    $region9: #{tpu_custom_call.1} parent=5 // pred_check
      _
    $region10: #{tpu_custom_call.1} parent=5 // pred_check_branch
      %116 = sbr.rel (%p113) target = $region12
    $region11: #{tpu_custom_call.1} parent=5 // pred_region
      %s117 = ssub.s32 %s9, 1
      // Predicated region
      $region13: #{tpu_custom_call.1} parent=11 // pred_check
        %p118 = pneg %p56
      $region14: #{tpu_custom_call.1} parent=11 // pred_check_branch
        %120 = sbr.rel (%p118) target = $region16
      $region15: #{tpu_custom_call.1} parent=11 // pred_region
        _
      $region16: #{tpu_custom_call.1} parent=11 // pred_fallthru
        _
      // Predicated region
      $region17: #{tpu_custom_call.1} parent=11 // pred_check
        %p121 = pneg %p77
      $region18: #{tpu_custom_call.1} parent=11 // pred_check_branch
        %123 = sbr.rel (%p121) target = $region20
      $region19: #{tpu_custom_call.1} parent=11 // pred_region
        _
      $region20: #{tpu_custom_call.1} parent=11 // pred_fallthru
        _
    $region12: #{tpu_custom_call.1} parent=5 // pred_fallthru
      _
    %p124 = scmp.lt.s32.totalorder %s9, 3
    // Predicated region
    $region21: #{tpu_custom_call.1} parent=5 // pred_check
      %p125 = pneg %p124
    $region22: #{tpu_custom_call.1} parent=5 // pred_check_branch
      %127 = sbr.rel (%p125) target = $region24
    $region23: #{tpu_custom_call.1} parent=5 // pred_region
      // Predicated region
      $region25: #{tpu_custom_call.1} parent=23 // pred_check
        %p128 = pneg %p29
      $region26: #{tpu_custom_call.1} parent=23 // pred_check_branch
        %130 = sbr.rel (%p128) target = $region28
      $region27: #{tpu_custom_call.1} parent=23 // pred_region
        %s131 = smul.u32 128, %s9
        %p132 = scmp.lt.s32.totalorder %s131, 383
        %s133 = scalar_select %p132, %s131, 383
        %s134 = smul.addr %s133, 2
        %s135 = smul.addr %s134, 4
        %s136 = scalar_lea.vmem %s0, %s135
        %s137 = smul.u32 128, %s9
      $region28: #{tpu_custom_call.1} parent=23 // pred_fallthru
        _
    $region24: #{tpu_custom_call.1} parent=5 // pred_fallthru
      _
    %p138 = scmp.le.s32.totalorder 1, %s9
    %p139 = scmp.lt.s32.totalorder %s9, 4
    %p140 = pnand %p138, %p139
    %p141 = pneg %p140
    // Predicated region
    $region29: #{tpu_custom_call.1} parent=5 // pred_check
      _
    $region30: #{tpu_custom_call.1} parent=5 // pred_check_branch
      %143 = sbr.rel (%p140) target = $region32
    $region31: #{tpu_custom_call.1} parent=5 // pred_region
      %s144 = ssub.s32 %s9, 1
      %s145 = smul.u32 128, %s14
      %p146 = scmp.lt.s32.totalorder %s145, 383
      %s147 = scalar_select %p146, %s145, 383
      %s148 = smul.addr %s147, 2
      %s149 = smul.addr %s148, 4
      %s150 = scalar_lea.vmem %s0, %s149
      %p151 = pneg %p35
      %p152 = pneg %p32
      %p153 = pneg %p56
      %p154 = pneg %p53
      %p155 = pneg %p77
      %p156 = pneg %p74
      %p157 = pneg %p103
      %p158 = pneg %p100
      %s159 = smul.u32 128, %s14
      %p160 = scmp.lt.s32.totalorder %s159, 383
      %s161 = scalar_select %p160, %s159, 383
      %s162 = smul.addr %s161, 8
      %s163 = scalar_lea.vmem %s3, %s162
      %s164 = smul.u32 128, %s14
      %p165 = scmp.lt.s32.totalorder %s164, 383
      %s166 = scalar_select %p165, %s164, 383
      %s167 = smul.addr %s166, 2
      %s168 = smul.addr %s167, 4
      %s169 = scalar_lea.vmem %s0, %s168
      %s170 = smul.u32 128, %s14
      %s171 = smul.u32 128, %s14
      %p172 = scmp.lt.s32.totalorder %s171, 383
      %s173 = scalar_select %p172, %s171, 383
      %s174 = smul.addr %s173, 8
      %s175 = scalar_lea.vmem %s3, %s174
      %s176 = smul.u32 128, %s14
      %v178 = vld [vmem:[%s169] sm:$0xff]
      %v179 = vld [vmem:[%s169 + $0x8] sm:$0xff]
      %v180 = vld [vmem:[%s169 + $0x10] sm:$0xff]
      %v181 = vld [vmem:[%s169 + $0x18] sm:$0xff]
      %v182 = vld [vmem:[%s169 + $0x20] sm:$0xff]
      %v183 = vld [vmem:[%s169 + $0x28] sm:$0xff]
      %v184 = vld [vmem:[%s169 + $0x30] sm:$0xff]
      %v185 = vld [vmem:[%s169 + $0x38] sm:$0xff]
      %v186 = vld [vmem:[%s169 + $0x40] sm:$0xff]
      %v187 = vld [vmem:[%s169 + $0x48] sm:$0xff]
      %v188 = vld [vmem:[%s169 + $0x50] sm:$0xff]
      %v189 = vld [vmem:[%s169 + $0x58] sm:$0xff]
      %v190 = vld [vmem:[%s169 + $0x60] sm:$0xff]
      %v191 = vld [vmem:[%s169 + $0x68] sm:$0xff]
      %v192 = vld [vmem:[%s169 + $0x70] sm:$0xff]
      %v193 = vld [vmem:[%s169 + $0x78] sm:$0xff]
      %v194 = vld [vmem:[%s169 + $0x80] sm:$0xff]
      %v195 = vld [vmem:[%s169 + $0x88] sm:$0xff]
      %v196 = vld [vmem:[%s169 + $0x90] sm:$0xff]
      %v197 = vld [vmem:[%s169 + $0x98] sm:$0xff]
      %v198 = vld [vmem:[%s169 + $0xa0] sm:$0xff]
      %v199 = vld [vmem:[%s169 + $0xa8] sm:$0xff]
      %v200 = vld [vmem:[%s169 + $0xb0] sm:$0xff]
      %v201 = vld [vmem:[%s169 + $0xb8] sm:$0xff]
      %v202 = vld [vmem:[%s169 + $0xc0] sm:$0xff]
      %v203 = vld [vmem:[%s169 + $0xc8] sm:$0xff]
      %v204 = vld [vmem:[%s169 + $0xd0] sm:$0xff]
      %v205 = vld [vmem:[%s169 + $0xd8] sm:$0xff]
      %v206 = vld [vmem:[%s169 + $0xe0] sm:$0xff]
      %v207 = vld [vmem:[%s169 + $0xe8] sm:$0xff]
      %v208 = vld [vmem:[%s169 + $0xf0] sm:$0xff]
      %v209 = vld [vmem:[%s169 + $0xf8] sm:$0xff]
      %v210 = vld [vmem:[%s169 + $0x100] sm:$0xff]
      %v211 = vld [vmem:[%s169 + $0x108] sm:$0xff]
      %v212 = vld [vmem:[%s169 + $0x110] sm:$0xff]
      %v213 = vld [vmem:[%s169 + $0x118] sm:$0xff]
      %v214 = vld [vmem:[%s169 + $0x120] sm:$0xff]
      %v215 = vld [vmem:[%s169 + $0x128] sm:$0xff]
      %v216 = vld [vmem:[%s169 + $0x130] sm:$0xff]
      %v217 = vld [vmem:[%s169 + $0x138] sm:$0xff]
      %v218 = vld [vmem:[%s169 + $0x140] sm:$0xff]
      %v219 = vld [vmem:[%s169 + $0x148] sm:$0xff]
      %v220 = vld [vmem:[%s169 + $0x150] sm:$0xff]
      %v221 = vld [vmem:[%s169 + $0x158] sm:$0xff]
      %v222 = vld [vmem:[%s169 + $0x160] sm:$0xff]
      %v223 = vld [vmem:[%s169 + $0x168] sm:$0xff]
      %v224 = vld [vmem:[%s169 + $0x170] sm:$0xff]
      %v225 = vld [vmem:[%s169 + $0x178] sm:$0xff]
      %v226 = vld [vmem:[%s169 + $0x180] sm:$0xff]
      %v227 = vld [vmem:[%s169 + $0x188] sm:$0xff]
      %v228 = vld [vmem:[%s169 + $0x190] sm:$0xff]
      %v229 = vld [vmem:[%s169 + $0x198] sm:$0xff]
      %v230 = vld [vmem:[%s169 + $0x1a0] sm:$0xff]
      %v231 = vld [vmem:[%s169 + $0x1a8] sm:$0xff]
      %v232 = vld [vmem:[%s169 + $0x1b0] sm:$0xff]
      %v233 = vld [vmem:[%s169 + $0x1b8] sm:$0xff]
      %v234 = vld [vmem:[%s169 + $0x1c0] sm:$0xff]
      %v235 = vld [vmem:[%s169 + $0x1c8] sm:$0xff]
      %v236 = vld [vmem:[%s169 + $0x1d0] sm:$0xff]
      %v237 = vld [vmem:[%s169 + $0x1d8] sm:$0xff]
      %v238 = vld [vmem:[%s169 + $0x1e0] sm:$0xff]
      %v239 = vld [vmem:[%s169 + $0x1e8] sm:$0xff]
      %v240 = vld [vmem:[%s169 + $0x1f0] sm:$0xff]
      %v241 = vld [vmem:[%s169 + $0x1f8] sm:$0xff]
      %v242 = vld [vmem:[%s169 + $0x200] sm:$0xff]
      %v243 = vld [vmem:[%s169 + $0x208] sm:$0xff]
      %v244 = vld [vmem:[%s169 + $0x210] sm:$0xff]
      %v245 = vld [vmem:[%s169 + $0x218] sm:$0xff]
      %v246 = vld [vmem:[%s169 + $0x220] sm:$0xff]
      %v247 = vld [vmem:[%s169 + $0x228] sm:$0xff]
      %v248 = vld [vmem:[%s169 + $0x230] sm:$0xff]
      %v249 = vld [vmem:[%s169 + $0x238] sm:$0xff]
      %v250 = vld [vmem:[%s169 + $0x240] sm:$0xff]
      %v251 = vld [vmem:[%s169 + $0x248] sm:$0xff]
      %v252 = vld [vmem:[%s169 + $0x250] sm:$0xff]
      %v253 = vld [vmem:[%s169 + $0x258] sm:$0xff]
      %v254 = vld [vmem:[%s169 + $0x260] sm:$0xff]
      %v255 = vld [vmem:[%s169 + $0x268] sm:$0xff]
      %v256 = vld [vmem:[%s169 + $0x270] sm:$0xff]
      %v257 = vld [vmem:[%s169 + $0x278] sm:$0xff]
      %v258 = vld [vmem:[%s169 + $0x280] sm:$0xff]
      %v259 = vld [vmem:[%s169 + $0x288] sm:$0xff]
      %v260 = vld [vmem:[%s169 + $0x290] sm:$0xff]
      %v261 = vld [vmem:[%s169 + $0x298] sm:$0xff]
      %v262 = vld [vmem:[%s169 + $0x2a0] sm:$0xff]
      %v263 = vld [vmem:[%s169 + $0x2a8] sm:$0xff]
      %v264 = vld [vmem:[%s169 + $0x2b0] sm:$0xff]
      %v265 = vld [vmem:[%s169 + $0x2b8] sm:$0xff]
      %v266 = vld [vmem:[%s169 + $0x2c0] sm:$0xff]
      %v267 = vld [vmem:[%s169 + $0x2c8] sm:$0xff]
      %v268 = vld [vmem:[%s169 + $0x2d0] sm:$0xff]
      %v269 = vld [vmem:[%s169 + $0x2d8] sm:$0xff]
      %v270 = vld [vmem:[%s169 + $0x2e0] sm:$0xff]
      %v271 = vld [vmem:[%s169 + $0x2e8] sm:$0xff]
      %v272 = vld [vmem:[%s169 + $0x2f0] sm:$0xff]
      %v273 = vld [vmem:[%s169 + $0x2f8] sm:$0xff]
      %v274 = vld [vmem:[%s169 + $0x300] sm:$0xff]
      %v275 = vld [vmem:[%s169 + $0x308] sm:$0xff]
      %v276 = vld [vmem:[%s169 + $0x310] sm:$0xff]
      %v277 = vld [vmem:[%s169 + $0x318] sm:$0xff]
      %v278 = vld [vmem:[%s169 + $0x320] sm:$0xff]
      %v279 = vld [vmem:[%s169 + $0x328] sm:$0xff]
      %v280 = vld [vmem:[%s169 + $0x330] sm:$0xff]
      %v281 = vld [vmem:[%s169 + $0x338] sm:$0xff]
      %v282 = vld [vmem:[%s169 + $0x340] sm:$0xff]
      %v283 = vld [vmem:[%s169 + $0x348] sm:$0xff]
      %v284 = vld [vmem:[%s169 + $0x350] sm:$0xff]
      %v285 = vld [vmem:[%s169 + $0x358] sm:$0xff]
      %v286 = vld [vmem:[%s169 + $0x360] sm:$0xff]
      %v287 = vld [vmem:[%s169 + $0x368] sm:$0xff]
      %v288 = vld [vmem:[%s169 + $0x370] sm:$0xff]
      %v289 = vld [vmem:[%s169 + $0x378] sm:$0xff]
      %v290 = vld [vmem:[%s169 + $0x380] sm:$0xff]
      %v291 = vld [vmem:[%s169 + $0x388] sm:$0xff]
      %v292 = vld [vmem:[%s169 + $0x390] sm:$0xff]
      %v293 = vld [vmem:[%s169 + $0x398] sm:$0xff]
      %v294 = vld [vmem:[%s169 + $0x3a0] sm:$0xff]
      %v295 = vld [vmem:[%s169 + $0x3a8] sm:$0xff]
      %v296 = vld [vmem:[%s169 + $0x3b0] sm:$0xff]
      %v297 = vld [vmem:[%s169 + $0x3b8] sm:$0xff]
      %v298 = vld [vmem:[%s169 + $0x3c0] sm:$0xff]
      %v299 = vld [vmem:[%s169 + $0x3c8] sm:$0xff]
      %v300 = vld [vmem:[%s169 + $0x3d0] sm:$0xff]
      %v301 = vld [vmem:[%s169 + $0x3d8] sm:$0xff]
      %v302 = vld [vmem:[%s169 + $0x3e0] sm:$0xff]
      %v303 = vld [vmem:[%s169 + $0x3e8] sm:$0xff]
      %v304 = vld [vmem:[%s169 + $0x3f0] sm:$0xff]
      %v305 = vld [vmem:[%s169 + $0x3f8] sm:$0xff]
      %v306 = vld [vmem:[%s1] sm:$0xf]
      %v307 = vld [vmem:[%s1 + $0x4] sm:$0xf]
      %v308 = vld [vmem:[%s1 + $0x8] sm:$0xf]
      %v309 = vld [vmem:[%s1 + $0xc] sm:$0xf]
      %v310 = vld [vmem:[%s1 + $0x10] sm:$0xf]
      %v311 = vld [vmem:[%s1 + $0x14] sm:$0xf]
      %v312 = vld [vmem:[%s1 + $0x18] sm:$0xf]
      %v313 = vld [vmem:[%s1 + $0x1c] sm:$0xf]
      %v314 = vld [vmem:[%s1 + $0x20] sm:$0xf]
      %v315 = vld [vmem:[%s1 + $0x24] sm:$0xf]
      %v316 = vld [vmem:[%s1 + $0x28] sm:$0xf]
      %v317 = vld [vmem:[%s1 + $0x2c] sm:$0xf]
      %v318 = vld [vmem:[%s1 + $0x30] sm:$0xf]
      %v319 = vld [vmem:[%s1 + $0x34] sm:$0xf]
      %v320 = vld [vmem:[%s1 + $0x38] sm:$0xf]
      %v321 = vld [vmem:[%s1 + $0x3c] sm:$0xf]
      %v322 = vld [vmem:[%s1 + $0x40] sm:$0xf]
      %v323 = vld [vmem:[%s1 + $0x44] sm:$0xf]
      %v324 = vld [vmem:[%s2] sm:$0x1]
      %v326 = vlaneseq
      %v327 = vshrl.u32 %v326, 7
      %v328 = vsub.s32 0, %v327
      %v329 = vrot.slane %v324, %v328
      %v459 = vunpack.c.l.b16 %v178
      %v460 = vunpack.c.h.b16 %v178
      %v461 = vunpack.c.l.b16 %v179
      %v462 = vunpack.c.h.b16 %v179
      %v463 = vunpack.c.l.b16 %v180
      %v464 = vunpack.c.h.b16 %v180
      %v465 = vunpack.c.l.b16 %v181
      %v466 = vunpack.c.h.b16 %v181
      %v467 = vunpack.c.l.b16 %v182
      %v468 = vunpack.c.h.b16 %v182
      %v469 = vunpack.c.l.b16 %v183
      %v470 = vunpack.c.h.b16 %v183
      %v471 = vunpack.c.l.b16 %v184
      %v472 = vunpack.c.h.b16 %v184
      %v473 = vunpack.c.l.b16 %v185
      %v474 = vunpack.c.h.b16 %v185
      %v475 = vunpack.c.l.b16 %v186
      %v476 = vunpack.c.h.b16 %v186
      %v477 = vunpack.c.l.b16 %v187
      %v478 = vunpack.c.h.b16 %v187
      %v479 = vunpack.c.l.b16 %v188
      %v480 = vunpack.c.h.b16 %v188
      %v481 = vunpack.c.l.b16 %v189
      %v482 = vunpack.c.h.b16 %v189
      %v483 = vunpack.c.l.b16 %v190
      %v484 = vunpack.c.h.b16 %v190
      %v485 = vunpack.c.l.b16 %v191
      %v486 = vunpack.c.h.b16 %v191
      %v487 = vunpack.c.l.b16 %v192
      %v488 = vunpack.c.h.b16 %v192
      %v489 = vunpack.c.l.b16 %v193
      %v490 = vunpack.c.h.b16 %v193
      %v491 = vunpack.c.l.b16 %v194
      %v492 = vunpack.c.h.b16 %v194
      %v493 = vunpack.c.l.b16 %v195
      %v494 = vunpack.c.h.b16 %v195
      %v495 = vunpack.c.l.b16 %v196
      %v496 = vunpack.c.h.b16 %v196
      %v497 = vunpack.c.l.b16 %v197
      %v498 = vunpack.c.h.b16 %v197
      %v499 = vunpack.c.l.b16 %v198
      %v500 = vunpack.c.h.b16 %v198
      %v501 = vunpack.c.l.b16 %v199
      %v502 = vunpack.c.h.b16 %v199
      %v503 = vunpack.c.l.b16 %v200
      %v504 = vunpack.c.h.b16 %v200
      %v505 = vunpack.c.l.b16 %v201
      %v506 = vunpack.c.h.b16 %v201
      %v507 = vunpack.c.l.b16 %v202
      %v508 = vunpack.c.h.b16 %v202
      %v509 = vunpack.c.l.b16 %v203
      %v510 = vunpack.c.h.b16 %v203
      %v511 = vunpack.c.l.b16 %v204
      %v512 = vunpack.c.h.b16 %v204
      %v513 = vunpack.c.l.b16 %v205
      %v514 = vunpack.c.h.b16 %v205
      %v515 = vunpack.c.l.b16 %v206
      %v516 = vunpack.c.h.b16 %v206
      %v517 = vunpack.c.l.b16 %v207
      %v518 = vunpack.c.h.b16 %v207
      %v519 = vunpack.c.l.b16 %v208
      %v520 = vunpack.c.h.b16 %v208
      %v521 = vunpack.c.l.b16 %v209
      %v522 = vunpack.c.h.b16 %v209
      %v523 = vunpack.c.l.b16 %v210
      %v524 = vunpack.c.h.b16 %v210
      %v525 = vunpack.c.l.b16 %v211
      %v526 = vunpack.c.h.b16 %v211
      %v527 = vunpack.c.l.b16 %v212
      %v528 = vunpack.c.h.b16 %v212
      %v529 = vunpack.c.l.b16 %v213
      %v530 = vunpack.c.h.b16 %v213
      %v531 = vunpack.c.l.b16 %v214
      %v532 = vunpack.c.h.b16 %v214
      %v533 = vunpack.c.l.b16 %v215
      %v534 = vunpack.c.h.b16 %v215
      %v535 = vunpack.c.l.b16 %v216
      %v536 = vunpack.c.h.b16 %v216
      %v537 = vunpack.c.l.b16 %v217
      %v538 = vunpack.c.h.b16 %v217
      %v539 = vunpack.c.l.b16 %v218
      %v540 = vunpack.c.h.b16 %v218
      %v541 = vunpack.c.l.b16 %v219
      %v542 = vunpack.c.h.b16 %v219
      %v543 = vunpack.c.l.b16 %v220
      %v544 = vunpack.c.h.b16 %v220
      %v545 = vunpack.c.l.b16 %v221
      %v546 = vunpack.c.h.b16 %v221
      %v547 = vunpack.c.l.b16 %v222
      %v548 = vunpack.c.h.b16 %v222
      %v549 = vunpack.c.l.b16 %v223
      %v550 = vunpack.c.h.b16 %v223
      %v551 = vunpack.c.l.b16 %v224
      %v552 = vunpack.c.h.b16 %v224
      %v553 = vunpack.c.l.b16 %v225
      %v554 = vunpack.c.h.b16 %v225
      %v555 = vunpack.c.l.b16 %v226
      %v556 = vunpack.c.h.b16 %v226
      %v557 = vunpack.c.l.b16 %v227
      %v558 = vunpack.c.h.b16 %v227
      %v559 = vunpack.c.l.b16 %v228
      %v560 = vunpack.c.h.b16 %v228
      %v561 = vunpack.c.l.b16 %v229
      %v562 = vunpack.c.h.b16 %v229
      %v563 = vunpack.c.l.b16 %v230
      %v564 = vunpack.c.h.b16 %v230
      %v565 = vunpack.c.l.b16 %v231
      %v566 = vunpack.c.h.b16 %v231
      %v567 = vunpack.c.l.b16 %v232
      %v568 = vunpack.c.h.b16 %v232
      %v569 = vunpack.c.l.b16 %v233
      %v570 = vunpack.c.h.b16 %v233
      %v571 = vunpack.c.l.b16 %v234
      %v572 = vunpack.c.h.b16 %v234
      %v573 = vunpack.c.l.b16 %v235
      %v574 = vunpack.c.h.b16 %v235
      %v575 = vunpack.c.l.b16 %v236
      %v576 = vunpack.c.h.b16 %v236
      %v577 = vunpack.c.l.b16 %v237
      %v578 = vunpack.c.h.b16 %v237
      %v579 = vunpack.c.l.b16 %v238
      %v580 = vunpack.c.h.b16 %v238
      %v581 = vunpack.c.l.b16 %v239
      %v582 = vunpack.c.h.b16 %v239
      %v583 = vunpack.c.l.b16 %v240
      %v584 = vunpack.c.h.b16 %v240
      %v585 = vunpack.c.l.b16 %v241
      %v586 = vunpack.c.h.b16 %v241
      %v587 = vunpack.c.l.b16 %v242
      %v588 = vunpack.c.h.b16 %v242
      %v589 = vunpack.c.l.b16 %v243
      %v590 = vunpack.c.h.b16 %v243
      %v591 = vunpack.c.l.b16 %v244
      %v592 = vunpack.c.h.b16 %v244
      %v593 = vunpack.c.l.b16 %v245
      %v594 = vunpack.c.h.b16 %v245
      %v595 = vunpack.c.l.b16 %v246
      %v596 = vunpack.c.h.b16 %v246
      %v597 = vunpack.c.l.b16 %v247
      %v598 = vunpack.c.h.b16 %v247
      %v599 = vunpack.c.l.b16 %v248
      %v600 = vunpack.c.h.b16 %v248
      %v601 = vunpack.c.l.b16 %v249
      %v602 = vunpack.c.h.b16 %v249
      %v603 = vunpack.c.l.b16 %v250
      %v604 = vunpack.c.h.b16 %v250
      %v605 = vunpack.c.l.b16 %v251
      %v606 = vunpack.c.h.b16 %v251
      %v607 = vunpack.c.l.b16 %v252
      %v608 = vunpack.c.h.b16 %v252
      %v609 = vunpack.c.l.b16 %v253
      %v610 = vunpack.c.h.b16 %v253
      %v611 = vunpack.c.l.b16 %v254
      %v612 = vunpack.c.h.b16 %v254
      %v613 = vunpack.c.l.b16 %v255
      %v614 = vunpack.c.h.b16 %v255
      %v615 = vunpack.c.l.b16 %v256
      %v616 = vunpack.c.h.b16 %v256
      %v617 = vunpack.c.l.b16 %v257
      %v618 = vunpack.c.h.b16 %v257
      %v619 = vunpack.c.l.b16 %v258
      %v620 = vunpack.c.h.b16 %v258
      %v621 = vunpack.c.l.b16 %v259
      %v622 = vunpack.c.h.b16 %v259
      %v623 = vunpack.c.l.b16 %v260
      %v624 = vunpack.c.h.b16 %v260
      %v625 = vunpack.c.l.b16 %v261
      %v626 = vunpack.c.h.b16 %v261
      %v627 = vunpack.c.l.b16 %v262
      %v628 = vunpack.c.h.b16 %v262
      %v629 = vunpack.c.l.b16 %v263
      %v630 = vunpack.c.h.b16 %v263
      %v631 = vunpack.c.l.b16 %v264
      %v632 = vunpack.c.h.b16 %v264
      %v633 = vunpack.c.l.b16 %v265
      %v634 = vunpack.c.h.b16 %v265
      %v635 = vunpack.c.l.b16 %v266
      %v636 = vunpack.c.h.b16 %v266
      %v637 = vunpack.c.l.b16 %v267
      %v638 = vunpack.c.h.b16 %v267
      %v639 = vunpack.c.l.b16 %v268
      %v640 = vunpack.c.h.b16 %v268
      %v641 = vunpack.c.l.b16 %v269
      %v642 = vunpack.c.h.b16 %v269
      %v643 = vunpack.c.l.b16 %v270
      %v644 = vunpack.c.h.b16 %v270
      %v645 = vunpack.c.l.b16 %v271
      %v646 = vunpack.c.h.b16 %v271
      %v647 = vunpack.c.l.b16 %v272
      %v648 = vunpack.c.h.b16 %v272
      %v649 = vunpack.c.l.b16 %v273
      %v650 = vunpack.c.h.b16 %v273
      %v651 = vunpack.c.l.b16 %v274
      %v652 = vunpack.c.h.b16 %v274
      %v653 = vunpack.c.l.b16 %v275
      %v654 = vunpack.c.h.b16 %v275
      %v655 = vunpack.c.l.b16 %v276
      %v656 = vunpack.c.h.b16 %v276
      %v657 = vunpack.c.l.b16 %v277
      %v658 = vunpack.c.h.b16 %v277
      %v659 = vunpack.c.l.b16 %v278
      %v660 = vunpack.c.h.b16 %v278
      %v661 = vunpack.c.l.b16 %v279
      %v662 = vunpack.c.h.b16 %v279
      %v663 = vunpack.c.l.b16 %v280
      %v664 = vunpack.c.h.b16 %v280
      %v665 = vunpack.c.l.b16 %v281
      %v666 = vunpack.c.h.b16 %v281
      %v667 = vunpack.c.l.b16 %v282
      %v668 = vunpack.c.h.b16 %v282
      %v669 = vunpack.c.l.b16 %v283
      %v670 = vunpack.c.h.b16 %v283
      %v671 = vunpack.c.l.b16 %v284
      %v672 = vunpack.c.h.b16 %v284
      %v673 = vunpack.c.l.b16 %v285
      %v674 = vunpack.c.h.b16 %v285
      %v675 = vunpack.c.l.b16 %v286
      %v676 = vunpack.c.h.b16 %v286
      %v677 = vunpack.c.l.b16 %v287
      %v678 = vunpack.c.h.b16 %v287
      %v679 = vunpack.c.l.b16 %v288
      %v680 = vunpack.c.h.b16 %v288
      %v681 = vunpack.c.l.b16 %v289
      %v682 = vunpack.c.h.b16 %v289
      %v683 = vunpack.c.l.b16 %v290
      %v684 = vunpack.c.h.b16 %v290
      %v685 = vunpack.c.l.b16 %v291
      %v686 = vunpack.c.h.b16 %v291
      %v687 = vunpack.c.l.b16 %v292
      %v688 = vunpack.c.h.b16 %v292
      %v689 = vunpack.c.l.b16 %v293
      %v690 = vunpack.c.h.b16 %v293
      %v691 = vunpack.c.l.b16 %v294
      %v692 = vunpack.c.h.b16 %v294
      %v693 = vunpack.c.l.b16 %v295
      %v694 = vunpack.c.h.b16 %v295
      %v695 = vunpack.c.l.b16 %v296
      %v696 = vunpack.c.h.b16 %v296
      %v697 = vunpack.c.l.b16 %v297
      %v698 = vunpack.c.h.b16 %v297
      %v699 = vunpack.c.l.b16 %v298
      %v700 = vunpack.c.h.b16 %v298
      %v701 = vunpack.c.l.b16 %v299
      %v702 = vunpack.c.h.b16 %v299
      %v703 = vunpack.c.l.b16 %v300
      %v704 = vunpack.c.h.b16 %v300
      %v705 = vunpack.c.l.b16 %v301
      %v706 = vunpack.c.h.b16 %v301
      %v707 = vunpack.c.l.b16 %v302
      %v708 = vunpack.c.h.b16 %v302
      %v709 = vunpack.c.l.b16 %v303
      %v710 = vunpack.c.h.b16 %v303
      %v711 = vunpack.c.l.b16 %v304
      %v712 = vunpack.c.h.b16 %v304
      %v713 = vunpack.c.l.b16 %v305
      %v714 = vunpack.c.h.b16 %v305
      %v715 = vpack.c.b16 %v461, %v459
      %v716 = vpack.c.b16 %v462, %v460
      %v717 = vpack.c.b16 %v465, %v463
      %v718 = vpack.c.b16 %v466, %v464
      %v719 = vpack.c.b16 %v469, %v467
      %v720 = vpack.c.b16 %v470, %v468
      %v721 = vpack.c.b16 %v473, %v471
      %v722 = vpack.c.b16 %v474, %v472
      %v723 = vpack.c.b16 %v477, %v475
      %v724 = vpack.c.b16 %v478, %v476
      %v725 = vpack.c.b16 %v481, %v479
      %v726 = vpack.c.b16 %v482, %v480
      %v727 = vpack.c.b16 %v485, %v483
      %v728 = vpack.c.b16 %v486, %v484
      %v729 = vpack.c.b16 %v489, %v487
      %v730 = vpack.c.b16 %v490, %v488
      %v731 = vpack.c.b16 %v493, %v491
      %v732 = vpack.c.b16 %v494, %v492
      %v733 = vpack.c.b16 %v497, %v495
      %v734 = vpack.c.b16 %v498, %v496
      %v735 = vpack.c.b16 %v501, %v499
      %v736 = vpack.c.b16 %v502, %v500
      %v737 = vpack.c.b16 %v505, %v503
      %v738 = vpack.c.b16 %v506, %v504
      %v739 = vpack.c.b16 %v509, %v507
      %v740 = vpack.c.b16 %v510, %v508
      %v741 = vpack.c.b16 %v513, %v511
      %v742 = vpack.c.b16 %v514, %v512
      %v743 = vpack.c.b16 %v517, %v515
      %v744 = vpack.c.b16 %v518, %v516
      %v745 = vpack.c.b16 %v521, %v519
      %v746 = vpack.c.b16 %v522, %v520
      %v747 = vpack.c.b16 %v525, %v523
      %v748 = vpack.c.b16 %v526, %v524
      %v749 = vpack.c.b16 %v529, %v527
      %v750 = vpack.c.b16 %v530, %v528
      %v751 = vpack.c.b16 %v533, %v531
      %v752 = vpack.c.b16 %v534, %v532
      %v753 = vpack.c.b16 %v537, %v535
      %v754 = vpack.c.b16 %v538, %v536
      %v755 = vpack.c.b16 %v541, %v539
      %v756 = vpack.c.b16 %v542, %v540
      %v757 = vpack.c.b16 %v545, %v543
      %v758 = vpack.c.b16 %v546, %v544
      %v759 = vpack.c.b16 %v549, %v547
      %v760 = vpack.c.b16 %v550, %v548
      %v761 = vpack.c.b16 %v553, %v551
      %v762 = vpack.c.b16 %v554, %v552
      %v763 = vpack.c.b16 %v557, %v555
      %v764 = vpack.c.b16 %v558, %v556
      %v765 = vpack.c.b16 %v561, %v559
      %v766 = vpack.c.b16 %v562, %v560
      %v767 = vpack.c.b16 %v565, %v563
      %v768 = vpack.c.b16 %v566, %v564
      %v769 = vpack.c.b16 %v569, %v567
      %v770 = vpack.c.b16 %v570, %v568
      %v771 = vpack.c.b16 %v573, %v571
      %v772 = vpack.c.b16 %v574, %v572
      %v773 = vpack.c.b16 %v577, %v575
      %v774 = vpack.c.b16 %v578, %v576
      %v775 = vpack.c.b16 %v581, %v579
      %v776 = vpack.c.b16 %v582, %v580
      %v777 = vpack.c.b16 %v585, %v583
      %v778 = vpack.c.b16 %v586, %v584
      %v779 = vpack.c.b16 %v589, %v587
      %v780 = vpack.c.b16 %v590, %v588
      %v781 = vpack.c.b16 %v593, %v591
      %v782 = vpack.c.b16 %v594, %v592
      %v783 = vpack.c.b16 %v597, %v595
      %v784 = vpack.c.b16 %v598, %v596
      %v785 = vpack.c.b16 %v601, %v599
      %v786 = vpack.c.b16 %v602, %v600
      %v787 = vpack.c.b16 %v605, %v603
      %v788 = vpack.c.b16 %v606, %v604
      %v789 = vpack.c.b16 %v609, %v607
      %v790 = vpack.c.b16 %v610, %v608
      %v791 = vpack.c.b16 %v613, %v611
      %v792 = vpack.c.b16 %v614, %v612
      %v793 = vpack.c.b16 %v617, %v615
      %v794 = vpack.c.b16 %v618, %v616
      %v795 = vpack.c.b16 %v621, %v619
      %v796 = vpack.c.b16 %v622, %v620
      %v797 = vpack.c.b16 %v625, %v623
      %v798 = vpack.c.b16 %v626, %v624
      %v799 = vpack.c.b16 %v629, %v627
      %v800 = vpack.c.b16 %v630, %v628
      %v801 = vpack.c.b16 %v633, %v631
      %v802 = vpack.c.b16 %v634, %v632
      %v803 = vpack.c.b16 %v637, %v635
      %v804 = vpack.c.b16 %v638, %v636
      %v805 = vpack.c.b16 %v641, %v639
      %v806 = vpack.c.b16 %v642, %v640
      %v807 = vpack.c.b16 %v645, %v643
      %v808 = vpack.c.b16 %v646, %v644
      %v809 = vpack.c.b16 %v649, %v647
      %v810 = vpack.c.b16 %v650, %v648
      %v811 = vpack.c.b16 %v653, %v651
      %v812 = vpack.c.b16 %v654, %v652
      %v813 = vpack.c.b16 %v657, %v655
      %v814 = vpack.c.b16 %v658, %v656
      %v815 = vpack.c.b16 %v661, %v659
      %v816 = vpack.c.b16 %v662, %v660
      %v817 = vpack.c.b16 %v665, %v663
      %v818 = vpack.c.b16 %v666, %v664
      %v819 = vpack.c.b16 %v669, %v667
      %v820 = vpack.c.b16 %v670, %v668
      %v821 = vpack.c.b16 %v673, %v671
      %v822 = vpack.c.b16 %v674, %v672
      %v823 = vpack.c.b16 %v677, %v675
      %v824 = vpack.c.b16 %v678, %v676
      %v825 = vpack.c.b16 %v681, %v679
      %v826 = vpack.c.b16 %v682, %v680
      %v827 = vpack.c.b16 %v685, %v683
      %v828 = vpack.c.b16 %v686, %v684
      %v829 = vpack.c.b16 %v689, %v687
      %v830 = vpack.c.b16 %v690, %v688
      %v831 = vpack.c.b16 %v693, %v691
      %v832 = vpack.c.b16 %v694, %v692
      %v833 = vpack.c.b16 %v697, %v695
      %v834 = vpack.c.b16 %v698, %v696
      %v835 = vpack.c.b16 %v701, %v699
      %v836 = vpack.c.b16 %v702, %v700
      %v837 = vpack.c.b16 %v705, %v703
      %v838 = vpack.c.b16 %v706, %v704
      %v839 = vpack.c.b16 %v709, %v707
      %v840 = vpack.c.b16 %v710, %v708
      %v841 = vpack.c.b16 %v713, %v711
      %v842 = vpack.c.b16 %v714, %v712
      %v925 = vunpack.c.l.b16 %v306
      %v926 = vunpack.c.l.b16 %v307
      %v927 = vunpack.c.l.b16 %v308
      %v928 = vunpack.c.l.b16 %v309
      %v929 = vunpack.c.l.b16 %v310
      %v930 = vunpack.c.l.b16 %v311
      %v931 = vunpack.c.l.b16 %v312
      %v932 = vunpack.c.l.b16 %v313
      %v933 = vunpack.c.l.b16 %v314
      %v934 = vunpack.c.l.b16 %v315
      %v935 = vunpack.c.l.b16 %v316
      %v936 = vunpack.c.l.b16 %v317
      %v937 = vunpack.c.l.b16 %v318
      %v938 = vunpack.c.l.b16 %v319
      %v939 = vunpack.c.l.b16 %v320
      %v940 = vunpack.c.l.b16 %v321
      %v941 = vunpack.c.l.b16 %v322
      %v942 = vunpack.c.l.b16 %v323
      %v943 = vpack.c.b16 %v926, %v925
      %v944 = vpack.c.b16 %v928, %v927
      %v945 = vpack.c.b16 %v930, %v929
      %v946 = vpack.c.b16 %v932, %v931
      %v947 = vpack.c.b16 %v934, %v933
      %v948 = vpack.c.b16 %v936, %v935
      %v949 = vpack.c.b16 %v938, %v937
      %v950 = vpack.c.b16 %v940, %v939
      %v951 = vpack.c.b16 %v942, %v941
      %vm961 = vcmask 130048
      %v963 = vsel %vm961, %v716, 0
      %v966 = vsel %vm961, %v718, 0
      %v969 = vsel %vm961, %v720, 0
      %v972 = vsel %vm961, %v722, 0
      %v975 = vsel %vm961, %v724, 0
      %v978 = vsel %vm961, %v726, 0
      %v981 = vsel %vm961, %v728, 0
      %v984 = vsel %vm961, %v730, 0
      %v987 = vsel %vm961, %v732, 0
      %v990 = vsel %vm961, %v734, 0
      %v993 = vsel %vm961, %v736, 0
      %v996 = vsel %vm961, %v738, 0
      %v999 = vsel %vm961, %v740, 0
      %v1002 = vsel %vm961, %v742, 0
      %v1005 = vsel %vm961, %v744, 0
      %v1008 = vsel %vm961, %v746, 0
      %v1011 = vsel %vm961, %v748, 0
      %v1014 = vsel %vm961, %v750, 0
      %v1017 = vsel %vm961, %v752, 0
      %v1020 = vsel %vm961, %v754, 0
      %v1023 = vsel %vm961, %v756, 0
      %v1026 = vsel %vm961, %v758, 0
      %v1029 = vsel %vm961, %v760, 0
      %v1032 = vsel %vm961, %v762, 0
      %v1035 = vsel %vm961, %v764, 0
      %v1038 = vsel %vm961, %v766, 0
      %v1041 = vsel %vm961, %v768, 0
      %v1044 = vsel %vm961, %v770, 0
      %v1047 = vsel %vm961, %v772, 0
      %v1050 = vsel %vm961, %v774, 0
      %v1053 = vsel %vm961, %v776, 0
      %v1056 = vsel %vm961, %v778, 0
      %v1059 = vsel %vm961, %v780, 0
      %v1062 = vsel %vm961, %v782, 0
      %v1065 = vsel %vm961, %v784, 0
      %v1068 = vsel %vm961, %v786, 0
      %v1071 = vsel %vm961, %v788, 0
      %v1074 = vsel %vm961, %v790, 0
      %v1077 = vsel %vm961, %v792, 0
      %v1080 = vsel %vm961, %v794, 0
      %v1083 = vsel %vm961, %v796, 0
      %v1086 = vsel %vm961, %v798, 0
      %v1089 = vsel %vm961, %v800, 0
      %v1092 = vsel %vm961, %v802, 0
      %v1095 = vsel %vm961, %v804, 0
      %v1098 = vsel %vm961, %v806, 0
      %v1101 = vsel %vm961, %v808, 0
      %v1104 = vsel %vm961, %v810, 0
      %v1107 = vsel %vm961, %v812, 0
      %v1110 = vsel %vm961, %v814, 0
      %v1113 = vsel %vm961, %v816, 0
      %v1116 = vsel %vm961, %v818, 0
      %v1119 = vsel %vm961, %v820, 0
      %v1122 = vsel %vm961, %v822, 0
      %v1125 = vsel %vm961, %v824, 0
      %v1128 = vsel %vm961, %v826, 0
      %v1131 = vsel %vm961, %v828, 0
      %v1134 = vsel %vm961, %v830, 0
      %v1137 = vsel %vm961, %v832, 0
      %v1140 = vsel %vm961, %v834, 0
      %v1143 = vsel %vm961, %v836, 0
      %v1146 = vsel %vm961, %v838, 0
      %v1149 = vsel %vm961, %v840, 0
      %v1152 = vsel %vm961, %v842, 0
      %1154 = vmatprep.subr.bf16.mxu0 0
      %1155 = vmatpush1.bf16.msra.mxu0 %v943
      %1156 = vmatprep.subr.bf16.mxu0 0
      %1157 = vmatpush1.bf16.msra.mxu0 %v944
      %1158 = vmatprep.subr.bf16.mxu0 0
      %1159 = vmatpush1.bf16.msra.mxu0 %v945
      %1160 = vmatprep.subr.bf16.mxu0 0
      %1161 = vmatpush1.bf16.msra.mxu0 %v946
      %1162 = vmatprep.subr.bf16.mxu0 0
      %1163 = vmatpush1.bf16.msra.mxu0 %v947
      %1164 = vmatprep.subr.bf16.mxu0 0
      %1165 = vmatpush1.bf16.msra.mxu0 %v948
      %1166 = vmatprep.subr.bf16.mxu0 0
      %1167 = vmatpush1.bf16.msra.mxu0 %v949
      %1168 = vmatprep.subr.bf16.mxu0 0
      %1169 = vmatpush1.bf16.msra.mxu0 %v950
      %1170 = vmatprep.subr.bf16.mxu0 0
      %1171 = vmatpush1.bf16.msra.mxu0 %v951
      %1172 = vmatprep.subr.bf16.mxu0 0
      %1173 = vmatpush1.bf16.msra.mxu0 0
      %1174 = vmatprep.subr.bf16.mxu0 0
      %1175 = vmatpush1.bf16.msra.mxu0 0
      %1176 = vmatprep.subr.bf16.mxu0 0
      %1177 = vmatpush1.bf16.msra.mxu0 0
      %1178 = vmatprep.subr.bf16.mxu0 0
      %1179 = vmatpush1.bf16.msra.mxu0 0
      %1180 = vmatprep.subr.bf16.mxu0 0
      %1181 = vmatpush1.bf16.msra.mxu0 0
      %1182 = vmatprep.subr.bf16.mxu0 0
      %1183 = vmatpush1.bf16.msra.mxu0 0
      %1184 = vmatprep.subr.bf16.mxu0 0
      %1185 = vmatpush1.bf16.msra.mxu0 0
      %1186 = vmatprep.mubr.bf16.mxu0 %v963
      %1187 = vmatmul.mubr.bf16.gmra.mrb[0].mxu0 %v715
      %v1188 = vpop.f32.mrb[0].mxu0
      %v1189 = vadd.f32 %v329, %v1188
      %v1190 = vpop.f32.mrb[0].mxu0
      %v1191 = vpop.f32.mrb[0].mxu0
      %v1192 = vadd.f32 %v329, %v1191
      %v1193 = vpop.f32.mrb[0].mxu0
      %1194 = vmatprep.mubr.bf16.mxu0 %v966
      %1195 = vmatmul.mubr.bf16.gmra.mrb[0].mxu0 %v717
      %v1196 = vpop.f32.mrb[0].mxu0
      %v1197 = vadd.f32 %v329, %v1196
      %v1198 = vpop.f32.mrb[0].mxu0
      %v1199 = vpop.f32.mrb[0].mxu0
      %v1200 = vadd.f32 %v329, %v1199
      %v1201 = vpop.f32.mrb[0].mxu0
      %1202 = vmatprep.mubr.bf16.mxu0 %v969
      %1203 = vmatmul.mubr.bf16.gmra.mrb[0].mxu0 %v719
      %v1204 = vpop.f32.mrb[0].mxu0
      %v1205 = vadd.f32 %v329, %v1204
      %v1206 = vpop.f32.mrb[0].mxu0
      %v1207 = vpop.f32.mrb[0].mxu0
      %v1208 = vadd.f32 %v329, %v1207
      %v1209 = vpop.f32.mrb[0].mxu0
      %1210 = vmatprep.mubr.bf16.mxu0 %v972
      %1211 = vmatmul.mubr.bf16.gmra.mrb[0].mxu0 %v721
      %v1212 = vpop.f32.mrb[0].mxu0
      %v1213 = vadd.f32 %v329, %v1212
      %v1214 = vpop.f32.mrb[0].mxu0
      %v1215 = vpop.f32.mrb[0].mxu0
      %v1216 = vadd.f32 %v329, %v1215
      %v1217 = vpop.f32.mrb[0].mxu0
      %1218 = vmatprep.mubr.bf16.mxu0 %v975
      %1219 = vmatmul.mubr.bf16.gmra.mrb[0].mxu0 %v723
      %v1220 = vpop.f32.mrb[0].mxu0
      %v1221 = vadd.f32 %v329, %v1220
      %v1222 = vpop.f32.mrb[0].mxu0
      %v1223 = vpop.f32.mrb[0].mxu0
      %v1224 = vadd.f32 %v329, %v1223
      %v1225 = vpop.f32.mrb[0].mxu0
      %1226 = vmatprep.mubr.bf16.mxu0 %v978
      %1227 = vmatmul.mubr.bf16.gmra.mrb[0].mxu0 %v725
      %v1228 = vpop.f32.mrb[0].mxu0
      %v1229 = vadd.f32 %v329, %v1228
      %v1230 = vpop.f32.mrb[0].mxu0
      %v1231 = vpop.f32.mrb[0].mxu0
      %v1232 = vadd.f32 %v329, %v1231
      %v1233 = vpop.f32.mrb[0].mxu0
      %1234 = vmatprep.mubr.bf16.mxu0 %v981
      %1235 = vmatmul.mubr.bf16.gmra.mrb[0].mxu0 %v727
      %v1236 = vpop.f32.mrb[0].mxu0
      %v1237 = vadd.f32 %v329, %v1236
      %v1238 = vpop.f32.mrb[0].mxu0
      %v1239 = vpop.f32.mrb[0].mxu0
      %v1240 = vadd.f32 %v329, %v1239
      %v1241 = vpop.f32.mrb[0].mxu0
      %1242 = vmatprep.mubr.bf16.mxu0 %v984
      %1243 = vmatmul.mubr.bf16.gmra.mrb[0].mxu0 %v729
      %v1244 = vpop.f32.mrb[0].mxu0
      %v1245 = vadd.f32 %v329, %v1244
      %v1246 = vpop.f32.mrb[0].mxu0
      %v1247 = vpop.f32.mrb[0].mxu0
      %v1248 = vadd.f32 %v329, %v1247
      %v1249 = vpop.f32.mrb[0].mxu0
      %1250 = vmatprep.mubr.bf16.mxu0 %v987
      %1251 = vmatmul.mubr.bf16.gmra.mrb[0].mxu0 %v731
      %v1252 = vpop.f32.mrb[0].mxu0
      %v1253 = vadd.f32 %v329, %v1252
      %v1254 = vpop.f32.mrb[0].mxu0
      %v1255 = vpop.f32.mrb[0].mxu0
      %v1256 = vadd.f32 %v329, %v1255
      %v1257 = vpop.f32.mrb[0].mxu0
      %1258 = vmatprep.mubr.bf16.mxu0 %v990
      %1259 = vmatmul.mubr.bf16.gmra.mrb[0].mxu0 %v733
      %v1260 = vpop.f32.mrb[0].mxu0
      %v1261 = vadd.f32 %v329, %v1260
      %v1262 = vpop.f32.mrb[0].mxu0
      %v1263 = vpop.f32.mrb[0].mxu0
      %v1264 = vadd.f32 %v329, %v1263
      %v1265 = vpop.f32.mrb[0].mxu0
      %1266 = vmatprep.mubr.bf16.mxu0 %v993
      %1267 = vmatmul.mubr.bf16.gmra.mrb[0].mxu0 %v735
      %v1268 = vpop.f32.mrb[0].mxu0
      %v1269 = vadd.f32 %v329, %v1268
      %v1270 = vpop.f32.mrb[0].mxu0
      %v1271 = vpop.f32.mrb[0].mxu0
      %v1272 = vadd.f32 %v329, %v1271
      %v1273 = vpop.f32.mrb[0].mxu0
      %1274 = vmatprep.mubr.bf16.mxu0 %v996
      %1275 = vmatmul.mubr.bf16.gmra.mrb[0].mxu0 %v737
      %v1276 = vpop.f32.mrb[0].mxu0
      %v1277 = vadd.f32 %v329, %v1276
      %v1278 = vpop.f32.mrb[0].mxu0
      %v1279 = vpop.f32.mrb[0].mxu0
      %v1280 = vadd.f32 %v329, %v1279
      %v1281 = vpop.f32.mrb[0].mxu0
      %1282 = vmatprep.mubr.bf16.mxu0 %v999
      %1283 = vmatmul.mubr.bf16.gmra.mrb[0].mxu0 %v739
      %v1284 = vpop.f32.mrb[0].mxu0
      %v1285 = vadd.f32 %v329, %v1284
      %v1286 = vpop.f32.mrb[0].mxu0
      %v1287 = vpop.f32.mrb[0].mxu0
      %v1288 = vadd.f32 %v329, %v1287
      %v1289 = vpop.f32.mrb[0].mxu0
      %1290 = vmatprep.mubr.bf16.mxu0 %v1002
      %1291 = vmatmul.mubr.bf16.gmra.mrb[0].mxu0 %v741
      %v1292 = vpop.f32.mrb[0].mxu0
      %v1293 = vadd.f32 %v329, %v1292
      %v1294 = vpop.f32.mrb[0].mxu0
      %v1295 = vpop.f32.mrb[0].mxu0
      %v1296 = vadd.f32 %v329, %v1295
      %v1297 = vpop.f32.mrb[0].mxu0
      %1298 = vmatprep.mubr.bf16.mxu0 %v1005
      %1299 = vmatmul.mubr.bf16.gmra.mrb[0].mxu0 %v743
      %v1300 = vpop.f32.mrb[0].mxu0
      %v1301 = vadd.f32 %v329, %v1300
      %v1302 = vpop.f32.mrb[0].mxu0
      %v1303 = vpop.f32.mrb[0].mxu0
      %v1304 = vadd.f32 %v329, %v1303
      %v1305 = vpop.f32.mrb[0].mxu0
      %1306 = vmatprep.mubr.bf16.mxu0 %v1008
      %1307 = vmatmul.mubr.bf16.gmra.mrb[0].mxu0 %v745
      %v1308 = vpop.f32.mrb[0].mxu0
      %v1309 = vadd.f32 %v329, %v1308
      %v1310 = vpop.f32.mrb[0].mxu0
      %v1311 = vpop.f32.mrb[0].mxu0
      %v1312 = vadd.f32 %v329, %v1311
      %v1313 = vpop.f32.mrb[0].mxu0
      %1314 = vmatprep.mubr.bf16.mxu0 %v1011
      %1315 = vmatmul.mubr.bf16.gmra.mrb[0].mxu0 %v747
      %v1316 = vpop.f32.mrb[0].mxu0
      %v1317 = vadd.f32 %v329, %v1316
      %v1318 = vpop.f32.mrb[0].mxu0
      %v1319 = vpop.f32.mrb[0].mxu0
      %v1320 = vadd.f32 %v329, %v1319
      %v1321 = vpop.f32.mrb[0].mxu0
      %1322 = vmatprep.mubr.bf16.mxu0 %v1014
      %1323 = vmatmul.mubr.bf16.gmra.mrb[0].mxu0 %v749
      %v1324 = vpop.f32.mrb[0].mxu0
      %v1325 = vadd.f32 %v329, %v1324
      %v1326 = vpop.f32.mrb[0].mxu0
      %v1327 = vpop.f32.mrb[0].mxu0
      %v1328 = vadd.f32 %v329, %v1327
      %v1329 = vpop.f32.mrb[0].mxu0
      %1330 = vmatprep.mubr.bf16.mxu0 %v1017
      %1331 = vmatmul.mubr.bf16.gmra.mrb[0].mxu0 %v751
      %v1332 = vpop.f32.mrb[0].mxu0
      %v1333 = vadd.f32 %v329, %v1332
      %v1334 = vpop.f32.mrb[0].mxu0
      %v1335 = vpop.f32.mrb[0].mxu0
      %v1336 = vadd.f32 %v329, %v1335
      %v1337 = vpop.f32.mrb[0].mxu0
      %1338 = vmatprep.mubr.bf16.mxu0 %v1020
      %1339 = vmatmul.mubr.bf16.gmra.mrb[0].mxu0 %v753
      %v1340 = vpop.f32.mrb[0].mxu0
      %v1341 = vadd.f32 %v329, %v1340
      %v1342 = vpop.f32.mrb[0].mxu0
      %v1343 = vpop.f32.mrb[0].mxu0
      %v1344 = vadd.f32 %v329, %v1343
      %v1345 = vpop.f32.mrb[0].mxu0
      %1346 = vmatprep.mubr.bf16.mxu0 %v1023
      %1347 = vmatmul.mubr.bf16.gmra.mrb[0].mxu0 %v755
      %v1348 = vpop.f32.mrb[0].mxu0
      %v1349 = vadd.f32 %v329, %v1348
      %v1350 = vpop.f32.mrb[0].mxu0
      %v1351 = vpop.f32.mrb[0].mxu0
      %v1352 = vadd.f32 %v329, %v1351
      %v1353 = vpop.f32.mrb[0].mxu0
      %1354 = vmatprep.mubr.bf16.mxu0 %v1026
      %1355 = vmatmul.mubr.bf16.gmra.mrb[0].mxu0 %v757
      %v1356 = vpop.f32.mrb[0].mxu0
      %v1357 = vadd.f32 %v329, %v1356
      %v1358 = vpop.f32.mrb[0].mxu0
      %v1359 = vpop.f32.mrb[0].mxu0
      %v1360 = vadd.f32 %v329, %v1359
      %v1361 = vpop.f32.mrb[0].mxu0
      %1362 = vmatprep.mubr.bf16.mxu0 %v1029
      %1363 = vmatmul.mubr.bf16.gmra.mrb[0].mxu0 %v759
      %v1364 = vpop.f32.mrb[0].mxu0
      %v1365 = vadd.f32 %v329, %v1364
      %v1366 = vpop.f32.mrb[0].mxu0
      %v1367 = vpop.f32.mrb[0].mxu0
      %v1368 = vadd.f32 %v329, %v1367
      %v1369 = vpop.f32.mrb[0].mxu0
      %1370 = vmatprep.mubr.bf16.mxu0 %v1032
      %1371 = vmatmul.mubr.bf16.gmra.mrb[0].mxu0 %v761
      %v1372 = vpop.f32.mrb[0].mxu0
      %v1373 = vadd.f32 %v329, %v1372
      %v1374 = vpop.f32.mrb[0].mxu0
      %v1375 = vpop.f32.mrb[0].mxu0
      %v1376 = vadd.f32 %v329, %v1375
      %v1377 = vpop.f32.mrb[0].mxu0
      %1378 = vmatprep.mubr.bf16.mxu0 %v1035
      %1379 = vmatmul.mubr.bf16.gmra.mrb[0].mxu0 %v763
      %v1380 = vpop.f32.mrb[0].mxu0
      %v1381 = vadd.f32 %v329, %v1380
      %v1382 = vpop.f32.mrb[0].mxu0
      %v1383 = vpop.f32.mrb[0].mxu0
      %v1384 = vadd.f32 %v329, %v1383
      %v1385 = vpop.f32.mrb[0].mxu0
      %1386 = vmatprep.mubr.bf16.mxu0 %v1038
      %1387 = vmatmul.mubr.bf16.gmra.mrb[0].mxu0 %v765
      %v1388 = vpop.f32.mrb[0].mxu0
      %v1389 = vadd.f32 %v329, %v1388
      %v1390 = vpop.f32.mrb[0].mxu0
      %v1391 = vpop.f32.mrb[0].mxu0
      %v1392 = vadd.f32 %v329, %v1391
      %v1393 = vpop.f32.mrb[0].mxu0
      %1394 = vmatprep.mubr.bf16.mxu0 %v1041
      %1395 = vmatmul.mubr.bf16.gmra.mrb[0].mxu0 %v767
      %v1396 = vpop.f32.mrb[0].mxu0
      %v1397 = vadd.f32 %v329, %v1396
      %v1398 = vpop.f32.mrb[0].mxu0
      %v1399 = vpop.f32.mrb[0].mxu0
      %v1400 = vadd.f32 %v329, %v1399
      %v1401 = vpop.f32.mrb[0].mxu0
      %1402 = vmatprep.mubr.bf16.mxu0 %v1044
      %1403 = vmatmul.mubr.bf16.gmra.mrb[0].mxu0 %v769
      %v1404 = vpop.f32.mrb[0].mxu0
      %v1405 = vadd.f32 %v329, %v1404
      %v1406 = vpop.f32.mrb[0].mxu0
      %v1407 = vpop.f32.mrb[0].mxu0
      %v1408 = vadd.f32 %v329, %v1407
      %v1409 = vpop.f32.mrb[0].mxu0
      %1410 = vmatprep.mubr.bf16.mxu0 %v1047
      %1411 = vmatmul.mubr.bf16.gmra.mrb[0].mxu0 %v771
      %v1412 = vpop.f32.mrb[0].mxu0
      %v1413 = vadd.f32 %v329, %v1412
      %v1414 = vpop.f32.mrb[0].mxu0
      %v1415 = vpop.f32.mrb[0].mxu0
      %v1416 = vadd.f32 %v329, %v1415
      %v1417 = vpop.f32.mrb[0].mxu0
      %1418 = vmatprep.mubr.bf16.mxu0 %v1050
      %1419 = vmatmul.mubr.bf16.gmra.mrb[0].mxu0 %v773
      %v1420 = vpop.f32.mrb[0].mxu0
      %v1421 = vadd.f32 %v329, %v1420
      %v1422 = vpop.f32.mrb[0].mxu0
      %v1423 = vpop.f32.mrb[0].mxu0
      %v1424 = vadd.f32 %v329, %v1423
      %v1425 = vpop.f32.mrb[0].mxu0
      %1426 = vmatprep.mubr.bf16.mxu0 %v1053
      %1427 = vmatmul.mubr.bf16.gmra.mrb[0].mxu0 %v775
      %v1428 = vpop.f32.mrb[0].mxu0
      %v1429 = vadd.f32 %v329, %v1428
      %v1430 = vpop.f32.mrb[0].mxu0
      %v1431 = vpop.f32.mrb[0].mxu0
      %v1432 = vadd.f32 %v329, %v1431
      %v1433 = vpop.f32.mrb[0].mxu0
      %1434 = vmatprep.mubr.bf16.mxu0 %v1056
      %1435 = vmatmul.mubr.bf16.gmra.mrb[0].mxu0 %v777
      %v1436 = vpop.f32.mrb[0].mxu0
      %v1437 = vadd.f32 %v329, %v1436
      %v1438 = vpop.f32.mrb[0].mxu0
      %v1439 = vpop.f32.mrb[0].mxu0
      %v1440 = vadd.f32 %v329, %v1439
      %v1441 = vpop.f32.mrb[0].mxu0
      %1442 = vmatprep.mubr.bf16.mxu0 %v1059
      %1443 = vmatmul.mubr.bf16.gmra.mrb[0].mxu0 %v779
      %v1444 = vpop.f32.mrb[0].mxu0
      %v1445 = vadd.f32 %v329, %v1444
      %v1446 = vpop.f32.mrb[0].mxu0
      %v1447 = vpop.f32.mrb[0].mxu0
      %v1448 = vadd.f32 %v329, %v1447
      %v1449 = vpop.f32.mrb[0].mxu0
      %1450 = vmatprep.mubr.bf16.mxu0 %v1062
      %1451 = vmatmul.mubr.bf16.gmra.mrb[0].mxu0 %v781
      %v1452 = vpop.f32.mrb[0].mxu0
      %v1453 = vadd.f32 %v329, %v1452
      %v1454 = vpop.f32.mrb[0].mxu0
      %v1455 = vpop.f32.mrb[0].mxu0
      %v1456 = vadd.f32 %v329, %v1455
      %v1457 = vpop.f32.mrb[0].mxu0
      %1458 = vmatprep.mubr.bf16.mxu0 %v1065
      %1459 = vmatmul.mubr.bf16.gmra.mrb[0].mxu0 %v783
      %v1460 = vpop.f32.mrb[0].mxu0
      %v1461 = vadd.f32 %v329, %v1460
      %v1462 = vpop.f32.mrb[0].mxu0
      %v1463 = vpop.f32.mrb[0].mxu0
      %v1464 = vadd.f32 %v329, %v1463
      %v1465 = vpop.f32.mrb[0].mxu0
      %1466 = vmatprep.mubr.bf16.mxu0 %v1068
      %1467 = vmatmul.mubr.bf16.gmra.mrb[0].mxu0 %v785
      %v1468 = vpop.f32.mrb[0].mxu0
      %v1469 = vadd.f32 %v329, %v1468
      %v1470 = vpop.f32.mrb[0].mxu0
      %v1471 = vpop.f32.mrb[0].mxu0
      %v1472 = vadd.f32 %v329, %v1471
      %v1473 = vpop.f32.mrb[0].mxu0
      %1474 = vmatprep.mubr.bf16.mxu0 %v1071
      %1475 = vmatmul.mubr.bf16.gmra.mrb[0].mxu0 %v787
      %v1476 = vpop.f32.mrb[0].mxu0
      %v1477 = vadd.f32 %v329, %v1476
      %v1478 = vpop.f32.mrb[0].mxu0
      %v1479 = vpop.f32.mrb[0].mxu0
      %v1480 = vadd.f32 %v329, %v1479
      %v1481 = vpop.f32.mrb[0].mxu0
      %1482 = vmatprep.mubr.bf16.mxu0 %v1074
      %1483 = vmatmul.mubr.bf16.gmra.mrb[0].mxu0 %v789
      %v1484 = vpop.f32.mrb[0].mxu0
      %v1485 = vadd.f32 %v329, %v1484
      %v1486 = vpop.f32.mrb[0].mxu0
      %v1487 = vpop.f32.mrb[0].mxu0
      %v1488 = vadd.f32 %v329, %v1487
      %v1489 = vpop.f32.mrb[0].mxu0
      %1490 = vmatprep.mubr.bf16.mxu0 %v1077
      %1491 = vmatmul.mubr.bf16.gmra.mrb[0].mxu0 %v791
      %v1492 = vpop.f32.mrb[0].mxu0
      %v1493 = vadd.f32 %v329, %v1492
      %v1494 = vpop.f32.mrb[0].mxu0
      %v1495 = vpop.f32.mrb[0].mxu0
      %v1496 = vadd.f32 %v329, %v1495
      %v1497 = vpop.f32.mrb[0].mxu0
      %1498 = vmatprep.mubr.bf16.mxu0 %v1080
      %1499 = vmatmul.mubr.bf16.gmra.mrb[0].mxu0 %v793
      %v1500 = vpop.f32.mrb[0].mxu0
      %v1501 = vadd.f32 %v329, %v1500
      %v1502 = vpop.f32.mrb[0].mxu0
      %v1503 = vpop.f32.mrb[0].mxu0
      %v1504 = vadd.f32 %v329, %v1503
      %v1505 = vpop.f32.mrb[0].mxu0
      %1506 = vmatprep.mubr.bf16.mxu0 %v1083
      %1507 = vmatmul.mubr.bf16.gmra.mrb[0].mxu0 %v795
      %v1508 = vpop.f32.mrb[0].mxu0
      %v1509 = vadd.f32 %v329, %v1508
      %v1510 = vpop.f32.mrb[0].mxu0
      %v1511 = vpop.f32.mrb[0].mxu0
      %v1512 = vadd.f32 %v329, %v1511
      %v1513 = vpop.f32.mrb[0].mxu0
      %1514 = vmatprep.mubr.bf16.mxu0 %v1086
      %1515 = vmatmul.mubr.bf16.gmra.mrb[0].mxu0 %v797
      %v1516 = vpop.f32.mrb[0].mxu0
      %v1517 = vadd.f32 %v329, %v1516
      %v1518 = vpop.f32.mrb[0].mxu0
      %v1519 = vpop.f32.mrb[0].mxu0
      %v1520 = vadd.f32 %v329, %v1519
      %v1521 = vpop.f32.mrb[0].mxu0
      %1522 = vmatprep.mubr.bf16.mxu0 %v1089
      %1523 = vmatmul.mubr.bf16.gmra.mrb[0].mxu0 %v799
      %v1524 = vpop.f32.mrb[0].mxu0
      %v1525 = vadd.f32 %v329, %v1524
      %v1526 = vpop.f32.mrb[0].mxu0
      %v1527 = vpop.f32.mrb[0].mxu0
      %v1528 = vadd.f32 %v329, %v1527
      %v1529 = vpop.f32.mrb[0].mxu0
      %1530 = vmatprep.mubr.bf16.mxu0 %v1092
      %1531 = vmatmul.mubr.bf16.gmra.mrb[0].mxu0 %v801
      %v1532 = vpop.f32.mrb[0].mxu0
      %v1533 = vadd.f32 %v329, %v1532
      %v1534 = vpop.f32.mrb[0].mxu0
      %v1535 = vpop.f32.mrb[0].mxu0
      %v1536 = vadd.f32 %v329, %v1535
      %v1537 = vpop.f32.mrb[0].mxu0
      %1538 = vmatprep.mubr.bf16.mxu0 %v1095
      %1539 = vmatmul.mubr.bf16.gmra.mrb[0].mxu0 %v803
      %v1540 = vpop.f32.mrb[0].mxu0
      %v1541 = vadd.f32 %v329, %v1540
      %v1542 = vpop.f32.mrb[0].mxu0
      %v1543 = vpop.f32.mrb[0].mxu0
      %v1544 = vadd.f32 %v329, %v1543
      %v1545 = vpop.f32.mrb[0].mxu0
      %1546 = vmatprep.mubr.bf16.mxu0 %v1098
      %1547 = vmatmul.mubr.bf16.gmra.mrb[0].mxu0 %v805
      %v1548 = vpop.f32.mrb[0].mxu0
      %v1549 = vadd.f32 %v329, %v1548
      %v1550 = vpop.f32.mrb[0].mxu0
      %v1551 = vpop.f32.mrb[0].mxu0
      %v1552 = vadd.f32 %v329, %v1551
      %v1553 = vpop.f32.mrb[0].mxu0
      %1554 = vmatprep.mubr.bf16.mxu0 %v1101
      %1555 = vmatmul.mubr.bf16.gmra.mrb[0].mxu0 %v807
      %v1556 = vpop.f32.mrb[0].mxu0
      %v1557 = vadd.f32 %v329, %v1556
      %v1558 = vpop.f32.mrb[0].mxu0
      %v1559 = vpop.f32.mrb[0].mxu0
      %v1560 = vadd.f32 %v329, %v1559
      %v1561 = vpop.f32.mrb[0].mxu0
      %1562 = vmatprep.mubr.bf16.mxu0 %v1104
      %1563 = vmatmul.mubr.bf16.gmra.mrb[0].mxu0 %v809
      %v1564 = vpop.f32.mrb[0].mxu0
      %v1565 = vadd.f32 %v329, %v1564
      %v1566 = vpop.f32.mrb[0].mxu0
      %v1567 = vpop.f32.mrb[0].mxu0
      %v1568 = vadd.f32 %v329, %v1567
      %v1569 = vpop.f32.mrb[0].mxu0
      %1570 = vmatprep.mubr.bf16.mxu0 %v1107
      %1571 = vmatmul.mubr.bf16.gmra.mrb[0].mxu0 %v811
      %v1572 = vpop.f32.mrb[0].mxu0
      %v1573 = vadd.f32 %v329, %v1572
      %v1574 = vpop.f32.mrb[0].mxu0
      %v1575 = vpop.f32.mrb[0].mxu0
      %v1576 = vadd.f32 %v329, %v1575
      %v1577 = vpop.f32.mrb[0].mxu0
      %1578 = vmatprep.mubr.bf16.mxu0 %v1110
      %1579 = vmatmul.mubr.bf16.gmra.mrb[0].mxu0 %v813
      %v1580 = vpop.f32.mrb[0].mxu0
      %v1581 = vadd.f32 %v329, %v1580
      %v1582 = vpop.f32.mrb[0].mxu0
      %v1583 = vpop.f32.mrb[0].mxu0
      %v1584 = vadd.f32 %v329, %v1583
      %v1585 = vpop.f32.mrb[0].mxu0
      %1586 = vmatprep.mubr.bf16.mxu0 %v1113
      %1587 = vmatmul.mubr.bf16.gmra.mrb[0].mxu0 %v815
      %v1588 = vpop.f32.mrb[0].mxu0
      %v1589 = vadd.f32 %v329, %v1588
      %v1590 = vpop.f32.mrb[0].mxu0
      %v1591 = vpop.f32.mrb[0].mxu0
      %v1592 = vadd.f32 %v329, %v1591
      %v1593 = vpop.f32.mrb[0].mxu0
      %1594 = vmatprep.mubr.bf16.mxu0 %v1116
      %1595 = vmatmul.mubr.bf16.gmra.mrb[0].mxu0 %v817
      %v1596 = vpop.f32.mrb[0].mxu0
      %v1597 = vadd.f32 %v329, %v1596
      %v1598 = vpop.f32.mrb[0].mxu0
      %v1599 = vpop.f32.mrb[0].mxu0
      %v1600 = vadd.f32 %v329, %v1599
      %v1601 = vpop.f32.mrb[0].mxu0
      %1602 = vmatprep.mubr.bf16.mxu0 %v1119
      %1603 = vmatmul.mubr.bf16.gmra.mrb[0].mxu0 %v819
      %v1604 = vpop.f32.mrb[0].mxu0
      %v1605 = vadd.f32 %v329, %v1604
      %v1606 = vpop.f32.mrb[0].mxu0
      %v1607 = vpop.f32.mrb[0].mxu0
      %v1608 = vadd.f32 %v329, %v1607
      %v1609 = vpop.f32.mrb[0].mxu0
      %1610 = vmatprep.mubr.bf16.mxu0 %v1122
      %1611 = vmatmul.mubr.bf16.gmra.mrb[0].mxu0 %v821
      %v1612 = vpop.f32.mrb[0].mxu0
      %v1613 = vadd.f32 %v329, %v1612
      %v1614 = vpop.f32.mrb[0].mxu0
      %v1615 = vpop.f32.mrb[0].mxu0
      %v1616 = vadd.f32 %v329, %v1615
      %v1617 = vpop.f32.mrb[0].mxu0
      %1618 = vmatprep.mubr.bf16.mxu0 %v1125
      %1619 = vmatmul.mubr.bf16.gmra.mrb[0].mxu0 %v823
      %v1620 = vpop.f32.mrb[0].mxu0
      %v1621 = vadd.f32 %v329, %v1620
      %v1622 = vpop.f32.mrb[0].mxu0
      %v1623 = vpop.f32.mrb[0].mxu0
      %v1624 = vadd.f32 %v329, %v1623
      %v1625 = vpop.f32.mrb[0].mxu0
      %1626 = vmatprep.mubr.bf16.mxu0 %v1128
      %1627 = vmatmul.mubr.bf16.gmra.mrb[0].mxu0 %v825
      %v1628 = vpop.f32.mrb[0].mxu0
      %v1629 = vadd.f32 %v329, %v1628
      %v1630 = vpop.f32.mrb[0].mxu0
      %v1631 = vpop.f32.mrb[0].mxu0
      %v1632 = vadd.f32 %v329, %v1631
      %v1633 = vpop.f32.mrb[0].mxu0
      %1634 = vmatprep.mubr.bf16.mxu0 %v1131
      %1635 = vmatmul.mubr.bf16.gmra.mrb[0].mxu0 %v827
      %v1636 = vpop.f32.mrb[0].mxu0
      %v1637 = vadd.f32 %v329, %v1636
      %v1638 = vpop.f32.mrb[0].mxu0
      %v1639 = vpop.f32.mrb[0].mxu0
      %v1640 = vadd.f32 %v329, %v1639
      %v1641 = vpop.f32.mrb[0].mxu0
      %1642 = vmatprep.mubr.bf16.mxu0 %v1134
      %1643 = vmatmul.mubr.bf16.gmra.mrb[0].mxu0 %v829
      %v1644 = vpop.f32.mrb[0].mxu0
      %v1645 = vadd.f32 %v329, %v1644
      %v1646 = vpop.f32.mrb[0].mxu0
      %v1647 = vpop.f32.mrb[0].mxu0
      %v1648 = vadd.f32 %v329, %v1647
      %v1649 = vpop.f32.mrb[0].mxu0
      %1650 = vmatprep.mubr.bf16.mxu0 %v1137
      %1651 = vmatmul.mubr.bf16.gmra.mrb[0].mxu0 %v831
      %v1652 = vpop.f32.mrb[0].mxu0
      %v1653 = vadd.f32 %v329, %v1652
      %v1654 = vpop.f32.mrb[0].mxu0
      %v1655 = vpop.f32.mrb[0].mxu0
      %v1656 = vadd.f32 %v329, %v1655
      %v1657 = vpop.f32.mrb[0].mxu0
      %1658 = vmatprep.mubr.bf16.mxu0 %v1140
      %1659 = vmatmul.mubr.bf16.gmra.mrb[0].mxu0 %v833
      %v1660 = vpop.f32.mrb[0].mxu0
      %v1661 = vadd.f32 %v329, %v1660
      %v1662 = vpop.f32.mrb[0].mxu0
      %v1663 = vpop.f32.mrb[0].mxu0
      %v1664 = vadd.f32 %v329, %v1663
      %v1665 = vpop.f32.mrb[0].mxu0
      %1666 = vmatprep.mubr.bf16.mxu0 %v1143
      %1667 = vmatmul.mubr.bf16.gmra.mrb[0].mxu0 %v835
      %v1668 = vpop.f32.mrb[0].mxu0
      %v1669 = vadd.f32 %v329, %v1668
      %v1670 = vpop.f32.mrb[0].mxu0
      %v1671 = vpop.f32.mrb[0].mxu0
      %v1672 = vadd.f32 %v329, %v1671
      %v1673 = vpop.f32.mrb[0].mxu0
      %1674 = vmatprep.mubr.bf16.mxu0 %v1146
      %1675 = vmatmul.mubr.bf16.gmra.mrb[0].mxu0 %v837
      %v1676 = vpop.f32.mrb[0].mxu0
      %v1677 = vadd.f32 %v329, %v1676
      %v1678 = vpop.f32.mrb[0].mxu0
      %v1679 = vpop.f32.mrb[0].mxu0
      %v1680 = vadd.f32 %v329, %v1679
      %v1681 = vpop.f32.mrb[0].mxu0
      %1682 = vmatprep.mubr.bf16.mxu0 %v1149
      %1683 = vmatmul.mubr.bf16.gmra.mrb[0].mxu0 %v839
      %v1684 = vpop.f32.mrb[0].mxu0
      %v1685 = vadd.f32 %v329, %v1684
      %v1686 = vpop.f32.mrb[0].mxu0
      %v1687 = vpop.f32.mrb[0].mxu0
      %v1688 = vadd.f32 %v329, %v1687
      %v1689 = vpop.f32.mrb[0].mxu0
      %1690 = vmatprep.mubr.bf16.mxu0 %v1152
      %1691 = vmatmul.mubr.bf16.gmra.mrb[0].mxu0 %v841
      %v1692 = vpop.f32.mrb[0].mxu0
      %v1693 = vadd.f32 %v329, %v1692
      %v1694 = vpop.f32.mrb[0].mxu0
      %v1695 = vpop.f32.mrb[0].mxu0
      %v1696 = vadd.f32 %v329, %v1695
      %v1697 = vpop.f32.mrb[0].mxu0
      %1698 = vdwg.mxu0
      %v1699 = vmax.f32 %v1189, 0.0
      %v1700 = vmax.f32 %v1192, 0.0
      %v1701 = vmax.f32 %v1197, 0.0
      %v1702 = vmax.f32 %v1200, 0.0
      %v1703 = vmax.f32 %v1205, 0.0
      %v1704 = vmax.f32 %v1208, 0.0
      %v1705 = vmax.f32 %v1213, 0.0
      %v1706 = vmax.f32 %v1216, 0.0
      %v1707 = vmax.f32 %v1221, 0.0
      %v1708 = vmax.f32 %v1224, 0.0
      %v1709 = vmax.f32 %v1229, 0.0
      %v1710 = vmax.f32 %v1232, 0.0
      %v1711 = vmax.f32 %v1237, 0.0
      %v1712 = vmax.f32 %v1240, 0.0
      %v1713 = vmax.f32 %v1245, 0.0
      %v1714 = vmax.f32 %v1248, 0.0
      %v1715 = vmax.f32 %v1253, 0.0
      %v1716 = vmax.f32 %v1256, 0.0
      %v1717 = vmax.f32 %v1261, 0.0
      %v1718 = vmax.f32 %v1264, 0.0
      %v1719 = vmax.f32 %v1269, 0.0
      %v1720 = vmax.f32 %v1272, 0.0
      %v1721 = vmax.f32 %v1277, 0.0
      %v1722 = vmax.f32 %v1280, 0.0
      %v1723 = vmax.f32 %v1285, 0.0
      %v1724 = vmax.f32 %v1288, 0.0
      %v1725 = vmax.f32 %v1293, 0.0
      %v1726 = vmax.f32 %v1296, 0.0
      %v1727 = vmax.f32 %v1301, 0.0
      %v1728 = vmax.f32 %v1304, 0.0
      %v1729 = vmax.f32 %v1309, 0.0
      %v1730 = vmax.f32 %v1312, 0.0
      %v1731 = vmax.f32 %v1317, 0.0
      %v1732 = vmax.f32 %v1320, 0.0
      %v1733 = vmax.f32 %v1325, 0.0
      %v1734 = vmax.f32 %v1328, 0.0
      %v1735 = vmax.f32 %v1333, 0.0
      %v1736 = vmax.f32 %v1336, 0.0
      %v1737 = vmax.f32 %v1341, 0.0
      %v1738 = vmax.f32 %v1344, 0.0
      %v1739 = vmax.f32 %v1349, 0.0
      %v1740 = vmax.f32 %v1352, 0.0
      %v1741 = vmax.f32 %v1357, 0.0
      %v1742 = vmax.f32 %v1360, 0.0
      %v1743 = vmax.f32 %v1365, 0.0
      %v1744 = vmax.f32 %v1368, 0.0
      %v1745 = vmax.f32 %v1373, 0.0
      %v1746 = vmax.f32 %v1376, 0.0
      %v1747 = vmax.f32 %v1381, 0.0
      %v1748 = vmax.f32 %v1384, 0.0
      %v1749 = vmax.f32 %v1389, 0.0
      %v1750 = vmax.f32 %v1392, 0.0
      %v1751 = vmax.f32 %v1397, 0.0
      %v1752 = vmax.f32 %v1400, 0.0
      %v1753 = vmax.f32 %v1405, 0.0
      %v1754 = vmax.f32 %v1408, 0.0
      %v1755 = vmax.f32 %v1413, 0.0
      %v1756 = vmax.f32 %v1416, 0.0
      %v1757 = vmax.f32 %v1421, 0.0
      %v1758 = vmax.f32 %v1424, 0.0
      %v1759 = vmax.f32 %v1429, 0.0
      %v1760 = vmax.f32 %v1432, 0.0
      %v1761 = vmax.f32 %v1437, 0.0
      %v1762 = vmax.f32 %v1440, 0.0
      %v1763 = vmax.f32 %v1445, 0.0
      %v1764 = vmax.f32 %v1448, 0.0
      %v1765 = vmax.f32 %v1453, 0.0
      %v1766 = vmax.f32 %v1456, 0.0
      %v1767 = vmax.f32 %v1461, 0.0
      %v1768 = vmax.f32 %v1464, 0.0
      %v1769 = vmax.f32 %v1469, 0.0
      %v1770 = vmax.f32 %v1472, 0.0
      %v1771 = vmax.f32 %v1477, 0.0
      %v1772 = vmax.f32 %v1480, 0.0
      %v1773 = vmax.f32 %v1485, 0.0
      %v1774 = vmax.f32 %v1488, 0.0
      %v1775 = vmax.f32 %v1493, 0.0
      %v1776 = vmax.f32 %v1496, 0.0
      %v1777 = vmax.f32 %v1501, 0.0
      %v1778 = vmax.f32 %v1504, 0.0
      %v1779 = vmax.f32 %v1509, 0.0
      %v1780 = vmax.f32 %v1512, 0.0
      %v1781 = vmax.f32 %v1517, 0.0
      %v1782 = vmax.f32 %v1520, 0.0
      %v1783 = vmax.f32 %v1525, 0.0
      %v1784 = vmax.f32 %v1528, 0.0
      %v1785 = vmax.f32 %v1533, 0.0
      %v1786 = vmax.f32 %v1536, 0.0
      %v1787 = vmax.f32 %v1541, 0.0
      %v1788 = vmax.f32 %v1544, 0.0
      %v1789 = vmax.f32 %v1549, 0.0
      %v1790 = vmax.f32 %v1552, 0.0
      %v1791 = vmax.f32 %v1557, 0.0
      %v1792 = vmax.f32 %v1560, 0.0
      %v1793 = vmax.f32 %v1565, 0.0
      %v1794 = vmax.f32 %v1568, 0.0
      %v1795 = vmax.f32 %v1573, 0.0
      %v1796 = vmax.f32 %v1576, 0.0
      %v1797 = vmax.f32 %v1581, 0.0
      %v1798 = vmax.f32 %v1584, 0.0
      %v1799 = vmax.f32 %v1589, 0.0
      %v1800 = vmax.f32 %v1592, 0.0
      %v1801 = vmax.f32 %v1597, 0.0
      %v1802 = vmax.f32 %v1600, 0.0
      %v1803 = vmax.f32 %v1605, 0.0
      %v1804 = vmax.f32 %v1608, 0.0
      %v1805 = vmax.f32 %v1613, 0.0
      %v1806 = vmax.f32 %v1616, 0.0
      %v1807 = vmax.f32 %v1621, 0.0
      %v1808 = vmax.f32 %v1624, 0.0
      %v1809 = vmax.f32 %v1629, 0.0
      %v1810 = vmax.f32 %v1632, 0.0
      %v1811 = vmax.f32 %v1637, 0.0
      %v1812 = vmax.f32 %v1640, 0.0
      %v1813 = vmax.f32 %v1645, 0.0
      %v1814 = vmax.f32 %v1648, 0.0
      %v1815 = vmax.f32 %v1653, 0.0
      %v1816 = vmax.f32 %v1656, 0.0
      %v1817 = vmax.f32 %v1661, 0.0
      %v1818 = vmax.f32 %v1664, 0.0
      %v1819 = vmax.f32 %v1669, 0.0
      %v1820 = vmax.f32 %v1672, 0.0
      %v1821 = vmax.f32 %v1677, 0.0
      %v1822 = vmax.f32 %v1680, 0.0
      %v1823 = vmax.f32 %v1685, 0.0
      %v1824 = vmax.f32 %v1688, 0.0
      %v1825 = vmax.f32 %v1693, 0.0
      %v1826 = vmax.f32 %v1696, 0.0
      %vm1827 = vcmask 523264
      %1828 = vst.msk [vmem:[%s175] sm:$0xff] %vm1827, %v1699
      %1829 = vst.msk [vmem:[%s175 + $0x8] sm:$0xff] %vm1827, %v1700
      %1830 = vst.msk [vmem:[%s175 + $0x10] sm:$0xff] %vm1827, %v1701
      %1831 = vst.msk [vmem:[%s175 + $0x18] sm:$0xff] %vm1827, %v1702
      %1832 = vst.msk [vmem:[%s175 + $0x20] sm:$0xff] %vm1827, %v1703
      %1833 = vst.msk [vmem:[%s175 + $0x28] sm:$0xff] %vm1827, %v1704
      %1834 = vst.msk [vmem:[%s175 + $0x30] sm:$0xff] %vm1827, %v1705
      %1835 = vst.msk [vmem:[%s175 + $0x38] sm:$0xff] %vm1827, %v1706
      %1836 = vst.msk [vmem:[%s175 + $0x40] sm:$0xff] %vm1827, %v1707
      %1837 = vst.msk [vmem:[%s175 + $0x48] sm:$0xff] %vm1827, %v1708
      %1838 = vst.msk [vmem:[%s175 + $0x50] sm:$0xff] %vm1827, %v1709
      %1839 = vst.msk [vmem:[%s175 + $0x58] sm:$0xff] %vm1827, %v1710
      %1840 = vst.msk [vmem:[%s175 + $0x60] sm:$0xff] %vm1827, %v1711
      %1841 = vst.msk [vmem:[%s175 + $0x68] sm:$0xff] %vm1827, %v1712
      %1842 = vst.msk [vmem:[%s175 + $0x70] sm:$0xff] %vm1827, %v1713
      %1843 = vst.msk [vmem:[%s175 + $0x78] sm:$0xff] %vm1827, %v1714
      %1844 = vst.msk [vmem:[%s175 + $0x80] sm:$0xff] %vm1827, %v1715
      %1845 = vst.msk [vmem:[%s175 + $0x88] sm:$0xff] %vm1827, %v1716
      %1846 = vst.msk [vmem:[%s175 + $0x90] sm:$0xff] %vm1827, %v1717
      %1847 = vst.msk [vmem:[%s175 + $0x98] sm:$0xff] %vm1827, %v1718
      %1848 = vst.msk [vmem:[%s175 + $0xa0] sm:$0xff] %vm1827, %v1719
      %1849 = vst.msk [vmem:[%s175 + $0xa8] sm:$0xff] %vm1827, %v1720
      %1850 = vst.msk [vmem:[%s175 + $0xb0] sm:$0xff] %vm1827, %v1721
      %1851 = vst.msk [vmem:[%s175 + $0xb8] sm:$0xff] %vm1827, %v1722
      %1852 = vst.msk [vmem:[%s175 + $0xc0] sm:$0xff] %vm1827, %v1723
      %1853 = vst.msk [vmem:[%s175 + $0xc8] sm:$0xff] %vm1827, %v1724
      %1854 = vst.msk [vmem:[%s175 + $0xd0] sm:$0xff] %vm1827, %v1725
      %1855 = vst.msk [vmem:[%s175 + $0xd8] sm:$0xff] %vm1827, %v1726
      %1856 = vst.msk [vmem:[%s175 + $0xe0] sm:$0xff] %vm1827, %v1727
      %1857 = vst.msk [vmem:[%s175 + $0xe8] sm:$0xff] %vm1827, %v1728
      %1858 = vst.msk [vmem:[%s175 + $0xf0] sm:$0xff] %vm1827, %v1729
      %1859 = vst.msk [vmem:[%s175 + $0xf8] sm:$0xff] %vm1827, %v1730
      %1860 = vst.msk [vmem:[%s175 + $0x100] sm:$0xff] %vm1827, %v1731
      %1861 = vst.msk [vmem:[%s175 + $0x108] sm:$0xff] %vm1827, %v1732
      %1862 = vst.msk [vmem:[%s175 + $0x110] sm:$0xff] %vm1827, %v1733
      %1863 = vst.msk [vmem:[%s175 + $0x118] sm:$0xff] %vm1827, %v1734
      %1864 = vst.msk [vmem:[%s175 + $0x120] sm:$0xff] %vm1827, %v1735
      %1865 = vst.msk [vmem:[%s175 + $0x128] sm:$0xff] %vm1827, %v1736
      %1866 = vst.msk [vmem:[%s175 + $0x130] sm:$0xff] %vm1827, %v1737
      %1867 = vst.msk [vmem:[%s175 + $0x138] sm:$0xff] %vm1827, %v1738
      %1868 = vst.msk [vmem:[%s175 + $0x140] sm:$0xff] %vm1827, %v1739
      %1869 = vst.msk [vmem:[%s175 + $0x148] sm:$0xff] %vm1827, %v1740
      %1870 = vst.msk [vmem:[%s175 + $0x150] sm:$0xff] %vm1827, %v1741
      %1871 = vst.msk [vmem:[%s175 + $0x158] sm:$0xff] %vm1827, %v1742
      %1872 = vst.msk [vmem:[%s175 + $0x160] sm:$0xff] %vm1827, %v1743
      %1873 = vst.msk [vmem:[%s175 + $0x168] sm:$0xff] %vm1827, %v1744
      %1874 = vst.msk [vmem:[%s175 + $0x170] sm:$0xff] %vm1827, %v1745
      %1875 = vst.msk [vmem:[%s175 + $0x178] sm:$0xff] %vm1827, %v1746
      %1876 = vst.msk [vmem:[%s175 + $0x180] sm:$0xff] %vm1827, %v1747
      %1877 = vst.msk [vmem:[%s175 + $0x188] sm:$0xff] %vm1827, %v1748
      %1878 = vst.msk [vmem:[%s175 + $0x190] sm:$0xff] %vm1827, %v1749
      %1879 = vst.msk [vmem:[%s175 + $0x198] sm:$0xff] %vm1827, %v1750
      %1880 = vst.msk [vmem:[%s175 + $0x1a0] sm:$0xff] %vm1827, %v1751
      %1881 = vst.msk [vmem:[%s175 + $0x1a8] sm:$0xff] %vm1827, %v1752
      %1882 = vst.msk [vmem:[%s175 + $0x1b0] sm:$0xff] %vm1827, %v1753
      %1883 = vst.msk [vmem:[%s175 + $0x1b8] sm:$0xff] %vm1827, %v1754
      %1884 = vst.msk [vmem:[%s175 + $0x1c0] sm:$0xff] %vm1827, %v1755
      %1885 = vst.msk [vmem:[%s175 + $0x1c8] sm:$0xff] %vm1827, %v1756
      %1886 = vst.msk [vmem:[%s175 + $0x1d0] sm:$0xff] %vm1827, %v1757
      %1887 = vst.msk [vmem:[%s175 + $0x1d8] sm:$0xff] %vm1827, %v1758
      %1888 = vst.msk [vmem:[%s175 + $0x1e0] sm:$0xff] %vm1827, %v1759
      %1889 = vst.msk [vmem:[%s175 + $0x1e8] sm:$0xff] %vm1827, %v1760
      %1890 = vst.msk [vmem:[%s175 + $0x1f0] sm:$0xff] %vm1827, %v1761
      %1891 = vst.msk [vmem:[%s175 + $0x1f8] sm:$0xff] %vm1827, %v1762
      %1892 = vst.msk [vmem:[%s175 + $0x200] sm:$0xff] %vm1827, %v1763
      %1893 = vst.msk [vmem:[%s175 + $0x208] sm:$0xff] %vm1827, %v1764
      %1894 = vst.msk [vmem:[%s175 + $0x210] sm:$0xff] %vm1827, %v1765
      %1895 = vst.msk [vmem:[%s175 + $0x218] sm:$0xff] %vm1827, %v1766
      %1896 = vst.msk [vmem:[%s175 + $0x220] sm:$0xff] %vm1827, %v1767
      %1897 = vst.msk [vmem:[%s175 + $0x228] sm:$0xff] %vm1827, %v1768
      %1898 = vst.msk [vmem:[%s175 + $0x230] sm:$0xff] %vm1827, %v1769
      %1899 = vst.msk [vmem:[%s175 + $0x238] sm:$0xff] %vm1827, %v1770
      %1900 = vst.msk [vmem:[%s175 + $0x240] sm:$0xff] %vm1827, %v1771
      %1901 = vst.msk [vmem:[%s175 + $0x248] sm:$0xff] %vm1827, %v1772
      %1902 = vst.msk [vmem:[%s175 + $0x250] sm:$0xff] %vm1827, %v1773
      %1903 = vst.msk [vmem:[%s175 + $0x258] sm:$0xff] %vm1827, %v1774
      %1904 = vst.msk [vmem:[%s175 + $0x260] sm:$0xff] %vm1827, %v1775
      %1905 = vst.msk [vmem:[%s175 + $0x268] sm:$0xff] %vm1827, %v1776
      %1906 = vst.msk [vmem:[%s175 + $0x270] sm:$0xff] %vm1827, %v1777
      %1907 = vst.msk [vmem:[%s175 + $0x278] sm:$0xff] %vm1827, %v1778
      %1908 = vst.msk [vmem:[%s175 + $0x280] sm:$0xff] %vm1827, %v1779
      %1909 = vst.msk [vmem:[%s175 + $0x288] sm:$0xff] %vm1827, %v1780
      %1910 = vst.msk [vmem:[%s175 + $0x290] sm:$0xff] %vm1827, %v1781
      %1911 = vst.msk [vmem:[%s175 + $0x298] sm:$0xff] %vm1827, %v1782
      %1912 = vst.msk [vmem:[%s175 + $0x2a0] sm:$0xff] %vm1827, %v1783
      %1913 = vst.msk [vmem:[%s175 + $0x2a8] sm:$0xff] %vm1827, %v1784
      %1914 = vst.msk [vmem:[%s175 + $0x2b0] sm:$0xff] %vm1827, %v1785
      %1915 = vst.msk [vmem:[%s175 + $0x2b8] sm:$0xff] %vm1827, %v1786
      %1916 = vst.msk [vmem:[%s175 + $0x2c0] sm:$0xff] %vm1827, %v1787
      %1917 = vst.msk [vmem:[%s175 + $0x2c8] sm:$0xff] %vm1827, %v1788
      %1918 = vst.msk [vmem:[%s175 + $0x2d0] sm:$0xff] %vm1827, %v1789
      %1919 = vst.msk [vmem:[%s175 + $0x2d8] sm:$0xff] %vm1827, %v1790
      %1920 = vst.msk [vmem:[%s175 + $0x2e0] sm:$0xff] %vm1827, %v1791
      %1921 = vst.msk [vmem:[%s175 + $0x2e8] sm:$0xff] %vm1827, %v1792
      %1922 = vst.msk [vmem:[%s175 + $0x2f0] sm:$0xff] %vm1827, %v1793
      %1923 = vst.msk [vmem:[%s175 + $0x2f8] sm:$0xff] %vm1827, %v1794
      %1924 = vst.msk [vmem:[%s175 + $0x300] sm:$0xff] %vm1827, %v1795
      %1925 = vst.msk [vmem:[%s175 + $0x308] sm:$0xff] %vm1827, %v1796
      %1926 = vst.msk [vmem:[%s175 + $0x310] sm:$0xff] %vm1827, %v1797
      %1927 = vst.msk [vmem:[%s175 + $0x318] sm:$0xff] %vm1827, %v1798
      %1928 = vst.msk [vmem:[%s175 + $0x320] sm:$0xff] %vm1827, %v1799
      %1929 = vst.msk [vmem:[%s175 + $0x328] sm:$0xff] %vm1827, %v1800
      %1930 = vst.msk [vmem:[%s175 + $0x330] sm:$0xff] %vm1827, %v1801
      %1931 = vst.msk [vmem:[%s175 + $0x338] sm:$0xff] %vm1827, %v1802
      %1932 = vst.msk [vmem:[%s175 + $0x340] sm:$0xff] %vm1827, %v1803
      %1933 = vst.msk [vmem:[%s175 + $0x348] sm:$0xff] %vm1827, %v1804
      %1934 = vst.msk [vmem:[%s175 + $0x350] sm:$0xff] %vm1827, %v1805
      %1935 = vst.msk [vmem:[%s175 + $0x358] sm:$0xff] %vm1827, %v1806
      %1936 = vst.msk [vmem:[%s175 + $0x360] sm:$0xff] %vm1827, %v1807
      %1937 = vst.msk [vmem:[%s175 + $0x368] sm:$0xff] %vm1827, %v1808
      %1938 = vst.msk [vmem:[%s175 + $0x370] sm:$0xff] %vm1827, %v1809
      %1939 = vst.msk [vmem:[%s175 + $0x378] sm:$0xff] %vm1827, %v1810
      %1940 = vst.msk [vmem:[%s175 + $0x380] sm:$0xff] %vm1827, %v1811
      %1941 = vst.msk [vmem:[%s175 + $0x388] sm:$0xff] %vm1827, %v1812
      %1942 = vst.msk [vmem:[%s175 + $0x390] sm:$0xff] %vm1827, %v1813
      %1943 = vst.msk [vmem:[%s175 + $0x398] sm:$0xff] %vm1827, %v1814
      %1944 = vst.msk [vmem:[%s175 + $0x3a0] sm:$0xff] %vm1827, %v1815
      %1945 = vst.msk [vmem:[%s175 + $0x3a8] sm:$0xff] %vm1827, %v1816
      %1946 = vst.msk [vmem:[%s175 + $0x3b0] sm:$0xff] %vm1827, %v1817
      %1947 = vst.msk [vmem:[%s175 + $0x3b8] sm:$0xff] %vm1827, %v1818
      %1948 = vst.msk [vmem:[%s175 + $0x3c0] sm:$0xff] %vm1827, %v1819
      %1949 = vst.msk [vmem:[%s175 + $0x3c8] sm:$0xff] %vm1827, %v1820
      %1950 = vst.msk [vmem:[%s175 + $0x3d0] sm:$0xff] %vm1827, %v1821
      %1951 = vst.msk [vmem:[%s175 + $0x3d8] sm:$0xff] %vm1827, %v1822
      %1952 = vst.msk [vmem:[%s175 + $0x3e0] sm:$0xff] %vm1827, %v1823
      %1953 = vst.msk [vmem:[%s175 + $0x3e8] sm:$0xff] %vm1827, %v1824
      %1954 = vst.msk [vmem:[%s175 + $0x3f0] sm:$0xff] %vm1827, %v1825
      %1955 = vst.msk [vmem:[%s175 + $0x3f8] sm:$0xff] %vm1827, %v1826
      %s1956 = smul.u32 128, %s14
      %p1957 = scmp.lt.s32.totalorder %s1956, 383
      %s1958 = scalar_select %p1957, %s1956, 383
      %s1959 = smul.addr %s1958, 8
      %s1960 = scalar_lea.vmem %s3, %s1959
      // Predicated region
      $region33: #{tpu_custom_call.1} parent=31 // pred_check
        %p1961 = pneg %p100
      $region34: #{tpu_custom_call.1} parent=31 // pred_check_branch
        %1963 = sbr.rel (%p1961) target = $region36
      $region35: #{tpu_custom_call.1} parent=31 // pred_region
        %s1964 = smul.u32 128, %s14
      $region36: #{tpu_custom_call.1} parent=31 // pred_fallthru
        _
    $region32: #{tpu_custom_call.1} parent=5 // pred_fallthru
      _
    %p1965 = scmp.le.s32.totalorder 2, %s9
    // Predicated region
    $region37: #{tpu_custom_call.1} parent=5 // pred_check
      %p1966 = pneg %p1965
    $region38: #{tpu_custom_call.1} parent=5 // pred_check_branch
      %1968 = sbr.rel (%p1966) target = $region40
    $region39: #{tpu_custom_call.1} parent=5 // pred_region
      %s1969 = ssub.s32 %s9, 2
      // Predicated region
      $region41: #{tpu_custom_call.1} parent=39 // pred_check
        %p1970 = pneg %p106
      $region42: #{tpu_custom_call.1} parent=39 // pred_check_branch
        %1972 = sbr.rel (%p1970) target = $region44
      $region43: #{tpu_custom_call.1} parent=39 // pred_region
        %s1973 = smul.u32 128, %s15
        %p1974 = scmp.lt.s32.totalorder %s1973, 383
        %s1975 = scalar_select %p1974, %s1973, 383
        %s1976 = smul.addr %s1975, 8
        %s1977 = scalar_lea.vmem %s3, %s1976
      $region44: #{tpu_custom_call.1} parent=39 // pred_fallthru
        _
    $region40: #{tpu_custom_call.1} parent=5 // pred_fallthru
      _
  $region6: #{tpu_custom_call.1} parent=0 // loop_footer
    %s13 = sadd.s32 1, %s9
  $region7: #{tpu_custom_call.1} parent=0 // loop_footer_branch
    %8 = sbr.rel target = $region3
  $region8: #{tpu_custom_call.1} parent=0 // loop_exit
    _

</llo_original>
